<compile_context>
chip_gen: v7x
topology: tpu7x:2x2x1
jax: 0.10.0
libtpu: 0.0.40
codegen_flags: <defaults>
</compile_context>

<pallas_src>
import functools

import jax
import jax.numpy as jnp
from jax.experimental import pallas as pl
from jax.experimental.pallas import tpu as pltpu


def _softmax_last(a):
    """f32 softmax over the last axis; denominator via EUP approx reciprocal."""
    m = jnp.max(a, axis=-1, keepdims=True)
    e = jnp.exp(a - m)
    return e * pl.reciprocal(jnp.sum(e, axis=-1, keepdims=True), approx=True)


def attention_kernel(x_ref, mask_ref, wqkv_ref, bqkv_ref, wproj_ref, bproj_ref,
                     o_ref, *, num_heads, t_len, qkv_bias_is_zero):
    # x_ref block: (1, N, C) bf16      mask_ref block: (1, N, 1) f32 (0/1)
    x = x_ref[0]                       # (N, C)
    mask = mask_ref[0]                 # (N, 1)
    n_tok, C = x.shape
    hd = C // num_heads
    n_mt = 2 * t_len                   # online + current template tokens
    n_s = n_tok - n_mt                 # search tokens

    # ---- fused QKV projection: one big bf16 MXU matmul, f32 accumulation ----
    # (1/sqrt(hd) already folded into the q columns of wqkv by the wrapper)
    if qkv_bias_is_zero:
        # masking x (N, C) instead of qkv (N, 3C): 3x fewer VPU multiplies;
        # exact because the qkv bias is zero so mask commutes with the matmul.
        xm = x * mask.astype(x.dtype)
        qkv = jnp.dot(xm, wqkv_ref[...], preferred_element_type=jnp.float32)
    else:
        qkv = jnp.dot(x, wqkv_ref[...], preferred_element_type=jnp.float32)
        qkv = (qkv + bqkv_ref[0]) * mask

    # ---- head split: cast to bf16 BEFORE the relayout, then one reshape +
    # transpose per tensor (no per-head 64-lane column slices / stacks) ----
    q = qkv[:, :C].astype(jnp.bfloat16)
    k = qkv[:, C:2 * C].astype(jnp.bfloat16)
    v = qkv[:, 2 * C:].astype(jnp.bfloat16)
    qh = jnp.swapaxes(q.reshape(n_tok, num_heads, hd), 0, 1)   # (H, N, hd)
    kh = jnp.swapaxes(k.reshape(n_tok, num_heads, hd), 0, 1)
    vh = jnp.swapaxes(v.reshape(n_tok, num_heads, hd), 0, 1)

    q_mt, q_s = qh[:, :n_mt, :], qh[:, n_mt:, :]
    k_mt, v_mt = kh[:, :n_mt, :], vh[:, :n_mt, :]

    # template queries attend only to template keys (all heads batched)
    s_mt = jnp.einsum('hqd,hkd->hqk', q_mt, k_mt,
                      preferred_element_type=jnp.float32)
    p_mt = _softmax_last(s_mt).astype(jnp.bfloat16)
    o_mt = jnp.einsum('hqk,hkd->hqd', p_mt, v_mt,
                      preferred_element_type=jnp.float32)       # (H, n_mt, hd)

    # search queries attend to all keys (all heads batched)
    # TODO(synk): tile the search-query axis (flash-style) if s_h*s_w grows
    # enough that the (H, n_s, N) f32 scores stress v7x's 64 MiB VMEM.
    s_s = jnp.einsum('hqd,hkd->hqk', q_s, kh,
                     preferred_element_type=jnp.float32)
    p_s = _softmax_last(s_s).astype(jnp.bfloat16)
    o_s = jnp.einsum('hqk,hkd->hqd', p_s, vh,
                     preferred_element_type=jnp.float32)        # (H, n_s, hd)

    # ---- head merge in registers (cast to bf16 first, then transpose back);
    # no VMEM scratch scatter + reload ----
    feat_mt = jnp.swapaxes(o_mt.astype(jnp.bfloat16), 0, 1).reshape(n_mt, C)
    feat_s = jnp.swapaxes(o_s.astype(jnp.bfloat16), 0, 1).reshape(n_s, C)
    feat = jnp.concatenate([feat_mt, feat_s], axis=0)           # (N, C) bf16

    # output projection: single big, lane-dense bf16 matmul (K = C = H*hd)
    out = jnp.dot(feat, wproj_ref[...],
                  preferred_element_type=jnp.float32) + bproj_ref[0]
    o_ref[0] = out.astype(o_ref.dtype)


def _const_spec(shape):
    """Single-buffered spec for weights/biases (constant index_map per step)."""
    try:
        return pl.BlockSpec(shape, lambda b: (0, 0), pipeline_mode=pl.Buffered(1))
    except Exception:  # older pallas without pipeline_mode: fall back silently
        return pl.BlockSpec(shape, lambda b: (0, 0))


def _vmem_limit_bytes(N, C, num_heads, n_mt, out_itemsize):
    """Per-grid-step VMEM estimate, capped per-chip with headroom."""
    bf16, f32 = 2, 4
    n_s = N - n_mt
    # x / mask / out are double-buffered by the pipeline; weights/biases are
    # single-buffered (constant index_map + pl.Buffered(1)).
    streamed = 2 * (N * C * bf16 + N * f32 + N * C * out_itemsize)
    resident = (3 * C * C + C * C) * bf16 + (3 * C + C) * f32
    temps = (N * 3 * C * f32                                        # qkv f32
             + 3 * N * C * bf16                                     # q/k/v heads
             + num_heads * (n_mt * n_mt + n_s * N) * (f32 + bf16)   # scores+probs
             + 2 * N * C * f32                                      # head outs + proj acc
             + N * C * bf16)                                        # merged features
    est = int(1.25 * (streamed + resident + temps))
    try:
        cap = int(pltpu.get_tpu_info().vmem_capacity_bytes)
    except Exception:
        cap = 64 << 20                      # conservative: v7x physical VMEM
    cap = int(cap * 0.72)                   # ~28% headroom for Mosaic internals
    return max(min(est, cap), min(32 << 20, cap))


def attention_forward(x, temp_mask, params, *, num_heads, t_h, t_w, s_h, s_w,
                      out_dtype=None):
    B, N, C = x.shape
    t_len = t_h * t_w
    n_mt = 2 * t_len
    assert N == n_mt + s_h * s_w
    assert C % num_heads == 0
    hd = C // num_heads
    scale = hd ** (-0.5)
    out_dtype = x.dtype if out_dtype is None else out_dtype

    # (B, N, 1) token mask: temp_mask over the first template's tokens, ones
    # for the second (online) template and the search region.
    ones = jnp.ones((B, N - t_len, 1), jnp.float32)
    mask = jnp.concatenate([temp_mask.astype(jnp.float32), ones], axis=1)

    # One-time weight prep (hoisted out of the kernel):
    #  * transpose to (in, out) so every in-kernel matmul is row-major
    #  * fold 1/sqrt(hd) into the q columns of Wqkv (and its bias)
    #  * cast matmul operands to bf16 (f32 accumulation inside the kernel)
    q_scale = jnp.concatenate([jnp.full((C,), scale, jnp.float32),
                               jnp.ones((2 * C,), jnp.float32)])
    wqkv_t = (params["w_qkv"].T.astype(jnp.float32) * q_scale[None, :]
              ).astype(jnp.bfloat16)                              # (C, 3C)
    bqkv = (params["b_qkv"].astype(jnp.float32) * q_scale).reshape(1, 3 * C)
    wproj_t = params["w_proj"].T.astype(jnp.bfloat16)             # (C, C)
    bproj = params["b_proj"].reshape(1, C).astype(jnp.float32)

    try:  # mask-on-x fast path is only exact when the qkv bias is zero
        qkv_bias_is_zero = not bool(jnp.any(params["b_qkv"] != 0))
    except Exception:  # traced params -> can't inspect; use the general path
        qkv_bias_is_zero = False

    kernel = functools.partial(attention_kernel, num_heads=num_heads,
                               t_len=t_len, qkv_bias_is_zero=qkv_bias_is_zero)

    return pl.pallas_call(
        kernel,
        out_shape=jax.ShapeDtypeStruct((B, N, C), out_dtype),
        grid=(B,),
        in_specs=[
            pl.BlockSpec((1, N, C), lambda b: (b, 0, 0)),
            pl.BlockSpec((1, N, 1), lambda b: (b, 0, 0)),
            _const_spec((C, 3 * C)),
            _const_spec((1, 3 * C)),
            _const_spec((C, C)),
            _const_spec((1, C)),
        ],
        out_specs=pl.BlockSpec((1, N, C), lambda b: (b, 0, 0)),
        compiler_params=pltpu.CompilerParams(
            dimension_semantics=("parallel",),
            vmem_limit_bytes=_vmem_limit_bytes(
                N, C, num_heads, n_mt, jnp.dtype(out_dtype).itemsize)),
    )(x.astype(jnp.bfloat16), mask, wqkv_t, bqkv, wproj_t, bproj)


def attention_reference(x, temp_mask, params, *, num_heads, t_h, t_w, s_h, s_w):
    """Pure-JAX (f32) mirror of the PyTorch forward() for verification."""
    B, N, C = x.shape
    hd = C // num_heads
    scale = hd ** (-0.5)
    qkv = x @ params["w_qkv"].T + params["b_qkv"]
    qkv = qkv.reshape(B, N, 3, num_heads, hd).transpose(2, 0, 3, 1, 4)
    x_mask = jnp.ones((B, N - t_h * t_w, 1), jnp.float32)
    x_mask = jnp.concatenate([temp_mask.astype(jnp.float32), x_mask], axis=1)
    x_mask = x_mask[None, :, None, :, :]
    qkv = qkv * x_mask
    q, k, v = qkv[0], qkv[1], qkv[2]
    n_mt = 2 * t_h * t_w
    q_mt, q_s = q[:, :, :n_mt], q[:, :, n_mt:]
    k_mt, v_mt = k[:, :, :n_mt], v[:, :, :n_mt]
    attn = jax.nn.softmax(q_mt @ jnp.swapaxes(k_mt, -2, -1) * scale, axis=-1)
    x_mt = jnp.swapaxes(attn @ v_mt, 1, 2).reshape(B, n_mt, C)
    attn = jax.nn.softmax(q_s @ jnp.swapaxes(k, -2, -1) * scale, axis=-1)
    x_s = jnp.swapaxes(attn @ v, 1, 2).reshape(B, s_h * s_w, C)
    out = jnp.concatenate([x_mt, x_s], axis=1)
    return out @ params["w_proj"].T + params["b_proj"]


if __name__ == "__main__":
    B = 2
    C = 32
    num_heads = 4
    t_h = t_w = 2          # template 2x2 -> 4 tokens (x2 templates = 8)
    s_h = s_w = 4          # search 4x4 -> 16 tokens
    N = 2 * t_h * t_w + s_h * s_w   # 24

    key = jax.random.PRNGKey(0)
    kx, km, k1, k2, k3, k4 = jax.random.split(key, 6)

    x = jax.random.normal(kx, (B, N, C), jnp.float32)
    temp_mask = (jax.random.uniform(km, (B, t_h * t_w, 1)) > 0.3).astype(jnp.float32)

    # qkv_bias=False (module default) -> zero qkv bias, exercises the
    # mask-on-x fast path
    params = {
        "w_qkv": 0.05 * jax.random.normal(k1, (3 * C, C), jnp.float32),
        "b_qkv": jnp.zeros((3 * C,), jnp.float32),
        "w_proj": 0.05 * jax.random.normal(k2, (C, C), jnp.float32),
        "b_proj": 0.01 * jax.random.normal(k3, (C,), jnp.float32),
    }

    out = attention_forward(x, temp_mask, params, num_heads=num_heads,
                            t_h=t_h, t_w=t_w, s_h=s_h, s_w=s_w)
    out = jax.block_until_ready(out)
    ref = attention_reference(x, temp_mask, params, num_heads=num_heads,
                              t_h=t_h, t_w=t_w, s_h=s_h, s_w=s_w)
    assert out.shape == (B, N, C)
    # bf16 matmul operands + approx reciprocal -> loosened tolerance vs f32 ref
    assert jnp.allclose(out, ref, atol=2e-2, rtol=2e-2), "mismatch (zero qkv bias)"

    # qkv_bias=True variant, exercises the mask-after-bias general path
    params_b = dict(params)
    params_b["b_qkv"] = 0.02 * jax.random.normal(k4, (3 * C,), jnp.float32)
    out_b = attention_forward(x, temp_mask, params_b, num_heads=num_heads,
                              t_h=t_h, t_w=t_w, s_h=s_h, s_w=s_w)
    out_b = jax.block_until_ready(out_b)
    ref_b = attention_reference(x, temp_mask, params_b, num_heads=num_heads,
                                t_h=t_h, t_w=t_w, s_h=s_h, s_w=s_w)
    assert jnp.allclose(out_b, ref_b, atol=2e-2, rtol=2e-2), "mismatch (qkv bias)"

    print("KERNEL_OK")
</pallas_src>

<mosaic_0001>
module attributes {stable_mosaic.version = 11 : i64} {
  func.func @attention_kernel(%arg0: i32, %arg1: memref<1x24x32xbf16, #tpu.memory_space<vmem>>, %arg2: memref<1x24x1xf32, #tpu.memory_space<vmem>>, %arg3: memref<32x96xbf16, #tpu.memory_space<vmem>>, %arg4: memref<1x96xf32, #tpu.memory_space<vmem>>, %arg5: memref<32x32xbf16, #tpu.memory_space<vmem>>, %arg6: memref<1x32xf32, #tpu.memory_space<vmem>>, %arg7: memref<1x24x32xf32, #tpu.memory_space<vmem>>) attributes {dimension_semantics = [#tpu.dimension_semantics<parallel>], iteration_bounds = array<i64: 2>, scalar_prefetch = 0 : i64, scratch_operands = 0 : i64, tpu.core_type = #tpu.core_type<tc>, window_params = [{transform_indices = @transform_0, window_bounds = array<i64: 1, 24, 32>}, {transform_indices = @transform_1, window_bounds = array<i64: 1, 24, 1>}, {pipeline_mode = #tpu.pipeline_mode<synchronous>, transform_indices = @transform_2, window_bounds = array<i64: 32, 96>}, {pipeline_mode = #tpu.pipeline_mode<synchronous>, transform_indices = @transform_3, window_bounds = array<i64: 1, 96>}, {pipeline_mode = #tpu.pipeline_mode<synchronous>, transform_indices = @transform_4, window_bounds = array<i64: 32, 32>}, {pipeline_mode = #tpu.pipeline_mode<synchronous>, transform_indices = @transform_5, window_bounds = array<i64: 1, 32>}, {transform_indices = @transform_6, window_bounds = array<i64: 1, 24, 32>}]} {
    %c0 = arith.constant 0 : index
    %c0_0 = arith.constant 0 : index
    %c0_1 = arith.constant 0 : index
    %0 = vector.load %arg1[%c0, %c0_0, %c0_1] : memref<1x24x32xbf16, #tpu.memory_space<vmem>>, vector<1x24x32xbf16>
    %1 = vector.shape_cast %0 : vector<1x24x32xbf16> to vector<24x32xbf16>
    %c0_2 = arith.constant 0 : index
    %c0_3 = arith.constant 0 : index
    %c0_4 = arith.constant 0 : index
    %2 = vector.load %arg2[%c0_2, %c0_3, %c0_4] : memref<1x24x1xf32, #tpu.memory_space<vmem>>, vector<1x24x1xf32>
    %3 = vector.shape_cast %2 : vector<1x24x1xf32> to vector<24x1xf32>
    %4 = arith.truncf %3 : vector<24x1xf32> to vector<24x1xbf16>
    %5 = vector.broadcast %4 : vector<24x1xbf16> to vector<24x32xbf16>
    %6 = arith.mulf %1, %5 : vector<24x32xbf16>
    %c0_5 = arith.constant 0 : index
    %c0_6 = arith.constant 0 : index
    %7 = vector.load %arg3[%c0_5, %c0_6] : memref<32x96xbf16, #tpu.memory_space<vmem>>, vector<32x96xbf16>
    %cst = arith.constant dense<0.000000e+00> : vector<24x96xf32>
    %8 = tpu.matmul %6, %7, %cst {dimension_numbers = #tpu.dot_dimension_numbers<[1], [0], [0], [1], [0, 0, 1, 1], [], []>} : vector<24x32xbf16>, vector<32x96xbf16>, vector<24x96xf32> -> vector<24x96xf32>
    %9 = vector.extract_strided_slice %8 {offsets = [0, 0], sizes = [24, 32], strides = [1, 1]} : vector<24x96xf32> to vector<24x32xf32>
    %10 = arith.truncf %9 : vector<24x32xf32> to vector<24x32xbf16>
    %11 = vector.extract_strided_slice %8 {offsets = [0, 32], sizes = [24, 32], strides = [1, 1]} : vector<24x96xf32> to vector<24x32xf32>
    %12 = arith.truncf %11 : vector<24x32xf32> to vector<24x32xbf16>
    %13 = vector.extract_strided_slice %8 {offsets = [0, 64], sizes = [24, 32], strides = [1, 1]} : vector<24x96xf32> to vector<24x32xf32>
    %14 = arith.truncf %13 : vector<24x32xf32> to vector<24x32xbf16>
    %15 = vector.shape_cast %10 : vector<24x32xbf16> to vector<24x4x8xbf16>
    %16 = tpu.transpose %15, [1, 0, 2] : vector<24x4x8xbf16> -> vector<4x24x8xbf16>
    %17 = vector.shape_cast %12 : vector<24x32xbf16> to vector<24x4x8xbf16>
    %18 = tpu.transpose %17, [1, 0, 2] : vector<24x4x8xbf16> -> vector<4x24x8xbf16>
    %19 = vector.shape_cast %14 : vector<24x32xbf16> to vector<24x4x8xbf16>
    %20 = tpu.transpose %19, [1, 0, 2] : vector<24x4x8xbf16> -> vector<4x24x8xbf16>
    %21 = vector.extract_strided_slice %16 {offsets = [0, 0, 0], sizes = [4, 8, 8], strides = [1, 1, 1]} : vector<4x24x8xbf16> to vector<4x8x8xbf16>
    %22 = vector.extract_strided_slice %16 {offsets = [0, 8, 0], sizes = [4, 16, 8], strides = [1, 1, 1]} : vector<4x24x8xbf16> to vector<4x16x8xbf16>
    %23 = vector.extract_strided_slice %18 {offsets = [0, 0, 0], sizes = [4, 8, 8], strides = [1, 1, 1]} : vector<4x24x8xbf16> to vector<4x8x8xbf16>
    %24 = vector.extract_strided_slice %20 {offsets = [0, 0, 0], sizes = [4, 8, 8], strides = [1, 1, 1]} : vector<4x24x8xbf16> to vector<4x8x8xbf16>
    "tpu.trace_start"() <{level = 10 : i32, message = "hqd,hkd->hqk"}> : () -> ()
    %cst_7 = arith.constant dense<0.000000e+00> : vector<4x8x8xf32>
    %25 = tpu.matmul %21, %23, %cst_7 {dimension_numbers = #tpu.dot_dimension_numbers<[2], [2], [1], [1], [0, 0, 0, 1, 1, 1], [0], [0]>} : vector<4x8x8xbf16>, vector<4x8x8xbf16>, vector<4x8x8xf32> -> vector<4x8x8xf32>
    "tpu.trace_stop"() : () -> ()
    %cst_8 = arith.constant dense<0xFF800000> : vector<4x8xf32>
    %26 = vector.multi_reduction <maximumf>, %25, %cst_8 [2] : vector<4x8x8xf32> to vector<4x8xf32>
    %27 = vector.shape_cast %26 : vector<4x8xf32> to vector<4x8x1xf32>
    %28 = vector.broadcast %27 : vector<4x8x1xf32> to vector<4x8x8xf32>
    %29 = arith.subf %25, %28 : vector<4x8x8xf32>
    %30 = math.exp %29 : vector<4x8x8xf32>
    %cst_9 = arith.constant dense<0.000000e+00> : vector<4x8xf32>
    %31 = vector.multi_reduction <add>, %30, %cst_9 [2] : vector<4x8x8xf32> to vector<4x8xf32>
    %32 = vector.shape_cast %31 : vector<4x8xf32> to vector<4x8x1xf32>
    %33 = tpu.reciprocal %32 {approx = true} : vector<4x8x1xf32> -> vector<4x8x1xf32>
    %34 = vector.broadcast %33 : vector<4x8x1xf32> to vector<4x8x8xf32>
    %35 = arith.mulf %30, %34 : vector<4x8x8xf32>
    %36 = arith.truncf %35 : vector<4x8x8xf32> to vector<4x8x8xbf16>
    "tpu.trace_start"() <{level = 10 : i32, message = "hqk,hkd->hqd"}> : () -> ()
    %cst_10 = arith.constant dense<0.000000e+00> : vector<4x8x8xf32>
    %37 = tpu.matmul %36, %24, %cst_10 {dimension_numbers = #tpu.dot_dimension_numbers<[2], [1], [1], [2], [0, 0, 0, 1, 1, 2], [0], [0]>} : vector<4x8x8xbf16>, vector<4x8x8xbf16>, vector<4x8x8xf32> -> vector<4x8x8xf32>
    "tpu.trace_stop"() : () -> ()
    "tpu.trace_start"() <{level = 10 : i32, message = "hqd,hkd->hqk"}> : () -> ()
    %cst_11 = arith.constant dense<0.000000e+00> : vector<4x16x24xf32>
    %38 = tpu.matmul %22, %18, %cst_11 {dimension_numbers = #tpu.dot_dimension_numbers<[2], [2], [1], [1], [0, 0, 0, 1, 1, 1], [0], [0]>} : vector<4x16x8xbf16>, vector<4x24x8xbf16>, vector<4x16x24xf32> -> vector<4x16x24xf32>
    "tpu.trace_stop"() : () -> ()
    %cst_12 = arith.constant dense<0xFF800000> : vector<4x16xf32>
    %39 = vector.multi_reduction <maximumf>, %38, %cst_12 [2] : vector<4x16x24xf32> to vector<4x16xf32>
    %40 = vector.shape_cast %39 : vector<4x16xf32> to vector<4x16x1xf32>
    %41 = vector.broadcast %40 : vector<4x16x1xf32> to vector<4x16x24xf32>
    %42 = arith.subf %38, %41 : vector<4x16x24xf32>
    %43 = math.exp %42 : vector<4x16x24xf32>
    %cst_13 = arith.constant dense<0.000000e+00> : vector<4x16xf32>
    %44 = vector.multi_reduction <add>, %43, %cst_13 [2] : vector<4x16x24xf32> to vector<4x16xf32>
    %45 = vector.shape_cast %44 : vector<4x16xf32> to vector<4x16x1xf32>
    %46 = tpu.reciprocal %45 {approx = true} : vector<4x16x1xf32> -> vector<4x16x1xf32>
    %47 = vector.broadcast %46 : vector<4x16x1xf32> to vector<4x16x24xf32>
    %48 = arith.mulf %43, %47 : vector<4x16x24xf32>
    %49 = arith.truncf %48 : vector<4x16x24xf32> to vector<4x16x24xbf16>
    "tpu.trace_start"() <{level = 10 : i32, message = "hqk,hkd->hqd"}> : () -> ()
    %cst_14 = arith.constant dense<0.000000e+00> : vector<4x16x8xf32>
    %50 = tpu.matmul %49, %20, %cst_14 {dimension_numbers = #tpu.dot_dimension_numbers<[2], [1], [1], [2], [0, 0, 0, 1, 1, 2], [0], [0]>} : vector<4x16x24xbf16>, vector<4x24x8xbf16>, vector<4x16x8xf32> -> vector<4x16x8xf32>
    "tpu.trace_stop"() : () -> ()
    %51 = arith.truncf %37 : vector<4x8x8xf32> to vector<4x8x8xbf16>
    %52 = tpu.transpose %51, [1, 0, 2] : vector<4x8x8xbf16> -> vector<8x4x8xbf16>
    %53 = vector.shape_cast %52 : vector<8x4x8xbf16> to vector<8x32xbf16>
    %54 = arith.truncf %50 : vector<4x16x8xf32> to vector<4x16x8xbf16>
    %55 = tpu.transpose %54, [1, 0, 2] : vector<4x16x8xbf16> -> vector<16x4x8xbf16>
    %56 = vector.shape_cast %55 : vector<16x4x8xbf16> to vector<16x32xbf16>
    %57 = tpu.concatenate %53, %56 in 0 : vector<8x32xbf16>, vector<16x32xbf16> -> vector<24x32xbf16>
    %c0_15 = arith.constant 0 : index
    %c0_16 = arith.constant 0 : index
    %58 = vector.load %arg5[%c0_15, %c0_16] : memref<32x32xbf16, #tpu.memory_space<vmem>>, vector<32x32xbf16>
    %cst_17 = arith.constant dense<0.000000e+00> : vector<24x32xf32>
    %59 = tpu.matmul %57, %58, %cst_17 {dimension_numbers = #tpu.dot_dimension_numbers<[1], [0], [0], [1], [0, 0, 1, 1], [], []>} : vector<24x32xbf16>, vector<32x32xbf16>, vector<24x32xf32> -> vector<24x32xf32>
    %c0_18 = arith.constant 0 : index
    %c0_19 = arith.constant 0 : index
    %60 = vector.load %arg6[%c0_18, %c0_19] : memref<1x32xf32, #tpu.memory_space<vmem>>, vector<1x32xf32>
    %61 = vector.shape_cast %60 : vector<1x32xf32> to vector<32xf32>
    %62 = vector.shape_cast %61 : vector<32xf32> to vector<1x32xf32>
    %63 = vector.broadcast %62 : vector<1x32xf32> to vector<24x32xf32>
    %64 = arith.addf %59, %63 : vector<24x32xf32>
    %c0_20 = arith.constant 0 : index
    %c0_21 = arith.constant 0 : index
    %c0_22 = arith.constant 0 : index
    %65 = vector.load %arg7[%c0_20, %c0_21, %c0_22] : memref<1x24x32xf32, #tpu.memory_space<vmem>>, vector<1x24x32xf32>
    %66 = vector.shape_cast %65 : vector<1x24x32xf32> to vector<24x32xf32>
    %67 = vector.shape_cast %64 : vector<24x32xf32> to vector<1x24x32xf32>
    tpu.vector_store %arg7[%c0_20, %c0_21, %c0_22], %67 {strides = array<i32>} : memref<1x24x32xf32, #tpu.memory_space<vmem>>, vector<1x24x32xf32>,
    return
  }
  func.func @transform_0(%arg0: i32) -> (i32, i32, i32) {
    %c0_i32 = arith.constant 0 : i32
    %c0_i32_0 = arith.constant 0 : i32
    %c0_i32_1 = arith.constant 0 : i32
    return %arg0, %c0_i32, %c0_i32_0 : i32, i32, i32
  }
  func.func @transform_1(%arg0: i32) -> (i32, i32, i32) {
    %c0_i32 = arith.constant 0 : i32
    %c0_i32_0 = arith.constant 0 : i32
    %c0_i32_1 = arith.constant 0 : i32
    return %arg0, %c0_i32, %c0_i32_0 : i32, i32, i32
  }
  func.func @transform_2(%arg0: i32) -> (i32, i32) {
    %c0_i32 = arith.constant 0 : i32
    %c0_i32_0 = arith.constant 0 : i32
    %c0_i32_1 = arith.constant 0 : i32
    return %c0_i32, %c0_i32_0 : i32, i32
  }
  func.func @transform_3(%arg0: i32) -> (i32, i32) {
    %c0_i32 = arith.constant 0 : i32
    %c0_i32_0 = arith.constant 0 : i32
    %c0_i32_1 = arith.constant 0 : i32
    return %c0_i32, %c0_i32_0 : i32, i32
  }
  func.func @transform_4(%arg0: i32) -> (i32, i32) {
    %c0_i32 = arith.constant 0 : i32
    %c0_i32_0 = arith.constant 0 : i32
    %c0_i32_1 = arith.constant 0 : i32
    return %c0_i32, %c0_i32_0 : i32, i32
  }
  func.func @transform_5(%arg0: i32) -> (i32, i32) {
    %c0_i32 = arith.constant 0 : i32
    %c0_i32_0 = arith.constant 0 : i32
    %c0_i32_1 = arith.constant 0 : i32
    return %c0_i32, %c0_i32_0 : i32, i32
  }
  func.func @transform_6(%arg0: i32) -> (i32, i32, i32) {
    %c0_i32 = arith.constant 0 : i32
    %c0_i32_0 = arith.constant 0 : i32
    %c0_i32_1 = arith.constant 0 : i32
    return %arg0, %c0_i32, %c0_i32_0 : i32, i32, i32
  }
}

</mosaic_0001>

<llo_original>
// kernel: tpu_custom_call.1
$region0: #{tpu_custom_call.1}
  #allocation0 [shape = 'u32[]', space=smem, size = 0x4, offset = 0x4, fixed_abs, tag = 'smem constant byte address 0x4 - core index']
  #allocation1 [shape = 'u32[144,128]{1,0:T(1,128)}', space=vmem, size = 0x12000, scoped, tag = 'internal scratch']
  %s0 = inlined_call_operand.vmem [shape: bf16[2,24,32], index: 0, kind: input, shape index: {}]
  %s1 = inlined_call_operand.vmem [shape: f32[2,24,1], index: 1, kind: input, shape index: {}]
  %s2 = inlined_call_operand.vmem [shape: bf16[32,96], index: 2, kind: input, shape index: {}]
  %s3 = inlined_call_operand.vmem [shape: f32[1,96], index: 3, kind: input, shape index: {}]
  %s4 = inlined_call_operand.vmem [shape: bf16[32,32], index: 4, kind: input, shape index: {}]
  %s5 = inlined_call_operand.vmem [shape: f32[1,32], index: 5, kind: input, shape index: {}]
  %s6 = inlined_call_operand.hbm [shape: f32[2,24,32], index: 6, kind: output, shape index: {}]
  %s7 = sld [smem:[#allocation0]]
  $region57: #{tpu_custom_call.1} parent=0
    _
  %s9 = ssub.s32 1, %s7
  %s10 = scalar_select 0, %s9, %s7
  $region1: #{tpu_custom_call.1} parent=0
    #allocation2 [shape = 'u8[24576]{0}', space=vmem, size = 0x6000, scoped, tag = 'output window, operand 0']
    #allocation3 [shape = 's32[2]{0}', space=sflag, size = 0x8, scoped, tag = 'scoped memory for tpu_custom_call.1']
    %11 = vsyncpa [#allocation3], 0
    %s12 = scalar_lea.sflag [#allocation3], 1
    %13 = vsyncpa %s12, 0
    loop: start=0, step=1, limit=4
    $region2: #{tpu_custom_call.1} parent=1 // loop_pre_header
      _
    $region3: #{tpu_custom_call.1} parent=1 // loop_header
      %s15 = sphi 0, %s19
      %p16 = scmp.ge.s32.totalorder %s15, 4
      %s25 = sphi 0, %s27
      %s28 = sphi 0, %s25
      %s29 = sphi 0, %s28
      %s45 = sphi 0, %s29
      %s51 = sphi 0, %s53
      %s54 = sphi 0, %s51
      %s55 = sphi 0, %s54
      %s71 = sphi 0, %s55
      %s75 = sphi 0, %s75
      %s77 = sphi 0, %s75
      %s78 = sphi 0, %s77
      %s92 = sphi 0, %s78
      %s96 = sphi 0, %s96
      %s98 = sphi 0, %s96
      %s99 = sphi 0, %s98
      %s113 = sphi 0, %s99
      %s117 = sphi 0, %s117
      %s119 = sphi 0, %s117
      %s120 = sphi 0, %s119
      %s134 = sphi 0, %s120
      %s138 = sphi 0, %s138
      %s140 = sphi 0, %s138
      %s141 = sphi 0, %s140
      %s155 = sphi 0, %s141
      %s161 = sphi 0, %s163
      %s164 = sphi 0, %s161
      %s165 = sphi 0, %s164
      %s181 = sphi 0, %s165
    $region4: #{tpu_custom_call.1} parent=1 // loop_header_branch
      %18 = sbr.rel (%p16) target = $region8
    $region5: #{tpu_custom_call.1} parent=1 // loop_body
      %s20 = ssub.s32 %s15, 1
      %s21 = ssub.s32 %s15, 2
      %s22 = sadd.s32 %s15, 1
      %s23 = ssub.s32 %s15, %s22
      %p24 = scmp.eq.s32.totalorder %s23, 0
      %s26 = sadd.s32 %s25, 1
      %s27 = scalar_select %p24, %s25, %s26
      %p30 = pneg %p24
      %p31 = scmp.eq.s32.totalorder %s15, 1
      %p32 = por %p30, %p31
      %p33 = scmp.ne.s32.totalorder %s25, %s28
      %p34 = scmp.eq.s32.totalorder %s15, 0
      %p35 = por %p33, %p34
      %p36 = scmp.ne.s32.totalorder %s25, %s28
      %p37 = scmp.eq.s32.totalorder %s20, 1
      %p38 = por %p36, %p37
      %p39 = scmp.ne.s32.totalorder %s28, %s29
      %p40 = scmp.eq.s32.totalorder %s20, 0
      %p41 = por %p39, %p40
      %p42 = scmp.ne.s32.totalorder %s28, %s29
      %p43 = scmp.eq.s32.totalorder %s21, 1
      %p44 = por %p42, %p43
      %p46 = scmp.ne.s32.totalorder %s29, %s45
      %p47 = scmp.eq.s32.totalorder %s21, 0
      %p48 = por %p46, %p47
      %s49 = ssub.s32 %s15, %s22
      %p50 = scmp.eq.s32.totalorder %s49, 0
      %s52 = sadd.s32 %s51, 1
      %s53 = scalar_select %p50, %s51, %s52
      %p56 = pneg %p50
      %p57 = scmp.eq.s32.totalorder %s15, 1
      %p58 = por %p56, %p57
      %p59 = scmp.ne.s32.totalorder %s51, %s54
      %p60 = scmp.eq.s32.totalorder %s15, 0
      %p61 = por %p59, %p60
      %p62 = scmp.ne.s32.totalorder %s51, %s54
      %p63 = scmp.eq.s32.totalorder %s20, 1
      %p64 = por %p62, %p63
      %p65 = scmp.ne.s32.totalorder %s54, %s55
      %p66 = scmp.eq.s32.totalorder %s20, 0
      %p67 = por %p65, %p66
      %p68 = scmp.ne.s32.totalorder %s54, %s55
      %p69 = scmp.eq.s32.totalorder %s21, 1
      %p70 = por %p68, %p69
      %p72 = scmp.ne.s32.totalorder %s55, %s71
      %p73 = scmp.eq.s32.totalorder %s21, 0
      %p74 = por %p72, %p73
      %s76 = sadd.s32 %s75, 1
      %p79 = scmp.eq.s32.totalorder %s15, 1
      %p80 = scmp.ne.s32.totalorder %s75, %s77
      %p81 = scmp.eq.s32.totalorder %s15, 0
      %p82 = por %p80, %p81
      %p83 = scmp.ne.s32.totalorder %s75, %s77
      %p84 = scmp.eq.s32.totalorder %s20, 1
      %p85 = por %p83, %p84
      %p86 = scmp.ne.s32.totalorder %s77, %s78
      %p87 = scmp.eq.s32.totalorder %s20, 0
      %p88 = por %p86, %p87
      %p89 = scmp.ne.s32.totalorder %s77, %s78
      %p90 = scmp.eq.s32.totalorder %s21, 1
      %p91 = por %p89, %p90
      %p93 = scmp.ne.s32.totalorder %s78, %s92
      %p94 = scmp.eq.s32.totalorder %s21, 0
      %p95 = por %p93, %p94
      %s97 = sadd.s32 %s96, 1
      %p100 = scmp.eq.s32.totalorder %s15, 1
      %p101 = scmp.ne.s32.totalorder %s96, %s98
      %p102 = scmp.eq.s32.totalorder %s15, 0
      %p103 = por %p101, %p102
      %p104 = scmp.ne.s32.totalorder %s96, %s98
      %p105 = scmp.eq.s32.totalorder %s20, 1
      %p106 = por %p104, %p105
      %p107 = scmp.ne.s32.totalorder %s98, %s99
      %p108 = scmp.eq.s32.totalorder %s20, 0
      %p109 = por %p107, %p108
      %p110 = scmp.ne.s32.totalorder %s98, %s99
      %p111 = scmp.eq.s32.totalorder %s21, 1
      %p112 = por %p110, %p111
      %p114 = scmp.ne.s32.totalorder %s99, %s113
      %p115 = scmp.eq.s32.totalorder %s21, 0
      %p116 = por %p114, %p115
      %s118 = sadd.s32 %s117, 1
      %p121 = scmp.eq.s32.totalorder %s15, 1
      %p122 = scmp.ne.s32.totalorder %s117, %s119
      %p123 = scmp.eq.s32.totalorder %s15, 0
      %p124 = por %p122, %p123
      %p125 = scmp.ne.s32.totalorder %s117, %s119
      %p126 = scmp.eq.s32.totalorder %s20, 1
      %p127 = por %p125, %p126
      %p128 = scmp.ne.s32.totalorder %s119, %s120
      %p129 = scmp.eq.s32.totalorder %s20, 0
      %p130 = por %p128, %p129
      %p131 = scmp.ne.s32.totalorder %s119, %s120
      %p132 = scmp.eq.s32.totalorder %s21, 1
      %p133 = por %p131, %p132
      %p135 = scmp.ne.s32.totalorder %s120, %s134
      %p136 = scmp.eq.s32.totalorder %s21, 0
      %p137 = por %p135, %p136
      %s139 = sadd.s32 %s138, 1
      %p142 = scmp.eq.s32.totalorder %s15, 1
      %p143 = scmp.ne.s32.totalorder %s138, %s140
      %p144 = scmp.eq.s32.totalorder %s15, 0
      %p145 = por %p143, %p144
      %p146 = scmp.ne.s32.totalorder %s138, %s140
      %p147 = scmp.eq.s32.totalorder %s20, 1
      %p148 = por %p146, %p147
      %p149 = scmp.ne.s32.totalorder %s140, %s141
      %p150 = scmp.eq.s32.totalorder %s20, 0
      %p151 = por %p149, %p150
      %p152 = scmp.ne.s32.totalorder %s140, %s141
      %p153 = scmp.eq.s32.totalorder %s21, 1
      %p154 = por %p152, %p153
      %p156 = scmp.ne.s32.totalorder %s141, %s155
      %p157 = scmp.eq.s32.totalorder %s21, 0
      %p158 = por %p156, %p157
      %s159 = ssub.s32 %s15, %s22
      %p160 = scmp.eq.s32.totalorder %s159, 0
      %s162 = sadd.s32 %s161, 1
      %s163 = scalar_select %p160, %s161, %s162
      %p166 = pneg %p160
      %p167 = scmp.eq.s32.totalorder %s15, 1
      %p168 = por %p166, %p167
      %p169 = scmp.ne.s32.totalorder %s161, %s164
      %p170 = scmp.eq.s32.totalorder %s15, 0
      %p171 = por %p169, %p170
      %p172 = scmp.ne.s32.totalorder %s161, %s164
      %p173 = scmp.eq.s32.totalorder %s20, 1
      %p174 = por %p172, %p173
      %p175 = scmp.ne.s32.totalorder %s164, %s165
      %p176 = scmp.eq.s32.totalorder %s20, 0
      %p177 = por %p175, %p176
      %p178 = scmp.ne.s32.totalorder %s164, %s165
      %p179 = scmp.eq.s32.totalorder %s21, 1
      %p180 = por %p178, %p179
      %p182 = scmp.ne.s32.totalorder %s165, %s181
      %p183 = scmp.eq.s32.totalorder %s21, 0
      %p184 = por %p182, %p183
      %p185 = scmp.le.s32.totalorder 1, %s15
      %p186 = scmp.lt.s32.totalorder %s15, 3
      %p187 = pnand %p185, %p186
      %p188 = pneg %p187
      // Predicated region
      $region9: #{tpu_custom_call.1} parent=5 // pred_check
        _
      $region10: #{tpu_custom_call.1} parent=5 // pred_check_branch
        %190 = sbr.rel (%p187) target = $region12
      $region11: #{tpu_custom_call.1} parent=5 // pred_region
        %s191 = ssub.s32 %s15, 1
        // Predicated region
        $region13: #{tpu_custom_call.1} parent=11 // pred_check
          %p192 = pneg %p88
        $region14: #{tpu_custom_call.1} parent=11 // pred_check_branch
          %194 = sbr.rel (%p192) target = $region16
        $region15: #{tpu_custom_call.1} parent=11 // pred_region
          _
        $region16: #{tpu_custom_call.1} parent=11 // pred_fallthru
          _
        // Predicated region
        $region17: #{tpu_custom_call.1} parent=11 // pred_check
          %p195 = pneg %p109
        $region18: #{tpu_custom_call.1} parent=11 // pred_check_branch
          %197 = sbr.rel (%p195) target = $region20
        $region19: #{tpu_custom_call.1} parent=11 // pred_region
          _
        $region20: #{tpu_custom_call.1} parent=11 // pred_fallthru
          _
        // Predicated region
        $region21: #{tpu_custom_call.1} parent=11 // pred_check
          %p198 = pneg %p130
        $region22: #{tpu_custom_call.1} parent=11 // pred_check_branch
          %200 = sbr.rel (%p198) target = $region24
        $region23: #{tpu_custom_call.1} parent=11 // pred_region
          _
        $region24: #{tpu_custom_call.1} parent=11 // pred_fallthru
          _
        // Predicated region
        $region25: #{tpu_custom_call.1} parent=11 // pred_check
          %p201 = pneg %p151
        $region26: #{tpu_custom_call.1} parent=11 // pred_check_branch
          %203 = sbr.rel (%p201) target = $region28
        $region27: #{tpu_custom_call.1} parent=11 // pred_region
          _
        $region28: #{tpu_custom_call.1} parent=11 // pred_fallthru
          _
      $region12: #{tpu_custom_call.1} parent=5 // pred_fallthru
        _
      %p204 = scmp.lt.s32.totalorder %s15, 2
      // Predicated region
      $region29: #{tpu_custom_call.1} parent=5 // pred_check
        %p205 = pneg %p204
      $region30: #{tpu_custom_call.1} parent=5 // pred_check_branch
        %207 = sbr.rel (%p205) target = $region32
      $region31: #{tpu_custom_call.1} parent=5 // pred_region
        // Predicated region
        $region33: #{tpu_custom_call.1} parent=31 // pred_check
          %p208 = pneg %p35
        $region34: #{tpu_custom_call.1} parent=31 // pred_check_branch
          %210 = sbr.rel (%p208) target = $region36
        $region35: #{tpu_custom_call.1} parent=31 // pred_region
          %p211 = scmp.lt.s32.totalorder %s15, 1
          %s212 = scalar_select %p211, %s15, 1
          %s213 = smul.addr %s212, 3
          %s214 = smul.addr %s213, 4
          %s215 = scalar_lea.vmem %s0, %s214
        $region36: #{tpu_custom_call.1} parent=31 // pred_fallthru
          _
        // Predicated region
        $region37: #{tpu_custom_call.1} parent=31 // pred_check
          %p216 = pneg %p61
        $region38: #{tpu_custom_call.1} parent=31 // pred_check_branch
          %218 = sbr.rel (%p216) target = $region40
        $region39: #{tpu_custom_call.1} parent=31 // pred_region
          %p219 = scmp.lt.s32.totalorder %s15, 1
          %s220 = scalar_select %p219, %s15, 1
          %s221 = smul.addr %s220, 3
          %s222 = smul.addr %s221, 8
          %s223 = scalar_lea.vmem %s1, %s222
        $region40: #{tpu_custom_call.1} parent=31 // pred_fallthru
          _
      $region32: #{tpu_custom_call.1} parent=5 // pred_fallthru
        _
      %p224 = scmp.le.s32.totalorder 1, %s15
      %p225 = scmp.lt.s32.totalorder %s15, 3
      %p226 = pnand %p224, %p225
      %p227 = pneg %p226
      // Predicated region
      $region41: #{tpu_custom_call.1} parent=5 // pred_check
        _
      $region42: #{tpu_custom_call.1} parent=5 // pred_check_branch
        %229 = sbr.rel (%p226) target = $region44
      $region43: #{tpu_custom_call.1} parent=5 // pred_region
        %s230 = ssub.s32 %s15, 1
        %p231 = scmp.lt.s32.totalorder %s20, 1
        %s232 = scalar_select %p231, %s20, 1
        %s233 = smul.addr %s232, 3
        %s234 = smul.addr %s233, 4
        %s235 = scalar_lea.vmem %s0, %s234
        %p236 = pneg %p41
        %p237 = pneg %p38
        %p238 = scmp.lt.s32.totalorder %s20, 1
        %s239 = scalar_select %p238, %s20, 1
        %s240 = smul.addr %s239, 3
        %s241 = smul.addr %s240, 8
        %s242 = scalar_lea.vmem %s1, %s241
        %p243 = pneg %p67
        %p244 = pneg %p64
        %p245 = pneg %p88
        %p246 = pneg %p85
        %p247 = pneg %p109
        %p248 = pneg %p106
        %p249 = pneg %p130
        %p250 = pneg %p127
        %p251 = pneg %p151
        %p252 = pneg %p148
        %p253 = pneg %p177
        %p254 = pneg %p174
        %s255 = sand.u32 %s164, 1
        %s256 = scalar_lea.sflag [#allocation3], %s255
        %s257 = sand.u32 %s164, 1
        %s258 = smul.addr %s257, 24
        %s259 = scalar_lea.vmem [#allocation2], %s258
        %p260 = scmp.lt.s32.totalorder %s20, 1
        %s261 = scalar_select %p260, %s20, 1
        %s262 = smul.addr %s261, 3
        %s263 = smul.addr %s262, 4
        %s264 = scalar_lea.vmem %s0, %s263
        %p265 = scmp.lt.s32.totalorder %s20, 1
        %s266 = scalar_select %p265, %s20, 1
        %s267 = smul.addr %s266, 3
        %s268 = smul.addr %s267, 8
        %s269 = scalar_lea.vmem %s1, %s268
        %v271 = vld [vmem:[%s264] sm:$0xf]
        %v272 = vld [vmem:[%s264 + $0x4] sm:$0xf]
        %v273 = vld [vmem:[%s264 + $0x8] sm:$0xf]
        %v274 = vld [vmem:[%s269] sm:$0xff]
        %v275 = vld [vmem:[%s269 + $0x8] sm:$0xff]
        %v276 = vld [vmem:[%s269 + $0x10] sm:$0xff]
        %v277 = vpack.c.bf16 %v275, %v274
        %v278 = vpack.c.bf16 %v276, %v276
        %280 = vset.pattern.permute.xlu0 0
        %281 = vperm.xlu0 %280, %v277
        %v282 = vpop.permute.xlu0 %281
        %284 = vset.pattern.permute.xlu0 0
        %285 = vperm.xlu0 %284, %v278
        %v286 = vpop.permute.xlu0 %285
        %v290 = vunpack.c.l.s4 839922192
        %v291 = vunpack.c.0.s8 %v290
        %v292 = vlaneseq
        %v293 = vshrl.u32 %v292, 7
        %v294 = vsub.s32 %v291, %v293
        %v295 = vrot.slane %v282, %v294
        %v297 = vunpack.c.l.s4 1985246804
        %v298 = vunpack.c.0.s8 %v297
        %v299 = vlaneseq
        %v300 = vshrl.u32 %v299, 7
        %v301 = vsub.s32 %v298, %v300
        %v302 = vrot.slane %v282, %v301
        %v304 = vunpack.c.l.s4 839922192
        %v305 = vunpack.c.0.s8 %v304
        %v306 = vlaneseq
        %v307 = vshrl.u32 %v306, 7
        %v308 = vsub.s32 %v305, %v307
        %v309 = vrot.slane %v286, %v308
        %v313 = vmul.bf16 %v271, %v295
        %v314 = vmul.bf16 %v272, %v302
        %v315 = vmul.bf16 %v273, %v309
        %v316 = vld [vmem:[%s2] sm:$0xf]
        %v317 = vld [vmem:[%s2 + $0x4] sm:$0xf]
        %v318 = vld [vmem:[%s2 + $0x8] sm:$0xf]
        %v319 = vld [vmem:[%s2 + $0xc] sm:$0xf]
        %v323 = vunpack.c.l.b16 %v313
        %v324 = vunpack.c.l.b16 %v314
        %v325 = vunpack.c.l.b16 %v315
        %v326 = vpack.c.b16 %v324, %v323
        %v327 = vpack.c.b16 %v325, %v325
        %v332 = vunpack.c.l.b16 %v316
        %v333 = vunpack.c.l.b16 %v317
        %v334 = vunpack.c.l.b16 %v318
        %v335 = vunpack.c.l.b16 %v319
        %v336 = vpack.c.b16 %v333, %v332
        %v337 = vpack.c.b16 %v335, %v334
        %vm340 = vcmask 261120
        %v342 = vsel %vm340, %v326, 0
        %v345 = vsel %vm340, %v327, 0
        %347 = vmatprep.subr.bf16.mxu0 0
        %348 = vmatpush1.bf16.msra.mxu0 %v336
        %349 = vmatprep.subr.bf16.mxu0 0
        %350 = vmatpush1.bf16.msra.mxu0 %v337
        %351 = vmatprep.subr.bf16.mxu0 0
        %352 = vmatpush1.bf16.msra.mxu0 0
        %353 = vmatprep.subr.bf16.mxu0 0
        %354 = vmatpush1.bf16.msra.mxu0 0
        %355 = vmatprep.subr.bf16.mxu0 0
        %356 = vmatpush1.bf16.msra.mxu0 0
        %357 = vmatprep.subr.bf16.mxu0 0
        %358 = vmatpush1.bf16.msra.mxu0 0
        %359 = vmatprep.subr.bf16.mxu0 0
        %360 = vmatpush1.bf16.msra.mxu0 0
        %361 = vmatprep.subr.bf16.mxu0 0
        %362 = vmatpush1.bf16.msra.mxu0 0
        %363 = vmatprep.subr.bf16.mxu0 0
        %364 = vmatpush1.bf16.msra.mxu0 0
        %365 = vmatprep.subr.bf16.mxu0 0
        %366 = vmatpush1.bf16.msra.mxu0 0
        %367 = vmatprep.subr.bf16.mxu0 0
        %368 = vmatpush1.bf16.msra.mxu0 0
        %369 = vmatprep.subr.bf16.mxu0 0
        %370 = vmatpush1.bf16.msra.mxu0 0
        %371 = vmatprep.subr.bf16.mxu0 0
        %372 = vmatpush1.bf16.msra.mxu0 0
        %373 = vmatprep.subr.bf16.mxu0 0
        %374 = vmatpush1.bf16.msra.mxu0 0
        %375 = vmatprep.subr.bf16.mxu0 0
        %376 = vmatpush1.bf16.msra.mxu0 0
        %377 = vmatprep.subr.bf16.mxu0 0
        %378 = vmatpush1.bf16.msra.mxu0 0
        %379 = vmatprep.mubr.bf16.mxu0 0
        %380 = vmatmul.mubr.bf16.gmra.mrb[0].mxu0 %v342
        %v381 = vpop.f32.mrb[0].mxu0
        %v382 = vadd.f32 0.0, %v381
        %v383 = vpop.f32.mrb[0].mxu0
        %v384 = vpop.f32.mrb[0].mxu0
        %v385 = vadd.f32 0.0, %v384
        %v386 = vpop.f32.mrb[0].mxu0
        %387 = vmatprep.mubr.bf16.mxu0 0
        %388 = vmatmul.mubr.bf16.gmra.mrb[0].mxu0 %v345
        %v389 = vpop.f32.mrb[0].mxu0
        %v390 = vadd.f32 0.0, %v389
        %v391 = vpop.f32.mrb[0].mxu0
        %v392 = vpop.f32.mrb[0].mxu0
        %v393 = vpop.f32.mrb[0].mxu0
        %394 = vdwg.mxu0
        %v395 = vpack.c.bf16 %v385, %v382
        %v396 = vpack.c.bf16 %v390, %v390
        %399 = vrot.lane.b32.xlu0 %v395, 120
        %v400 = vpop.permute.xlu0 %399
        %401 = vrot.lane.b32.xlu0 %v396, 120
        %v402 = vpop.permute.xlu0 %401
        %404 = vrot.lane.b32.xlu0 %v395, 112
        %v405 = vpop.permute.xlu0 %404
        %406 = vrot.lane.b32.xlu0 %v396, 112
        %v407 = vpop.permute.xlu0 %406
        %409 = vrot.lane.b32.xlu0 %v395, 104
        %v410 = vpop.permute.xlu0 %409
        %411 = vrot.lane.b32.xlu0 %v396, 104
        %v412 = vpop.permute.xlu0 %411
        %v414 = vcombine.high %v395, 0
        %v416 = vunpack.c.l.s4 1983009808
        %v417 = vunpack.c.0.s8 %v416
        %v418 = vlaneseq
        %v419 = vshrl.u32 %v418, 7
        %v420 = vsub.s32 %v417, %v419
        %v421 = vrot.slane %v395, %v420
        %v423 = vunpack.c.l.s4 1983009808
        %v424 = vunpack.c.0.s8 %v423
        %v425 = vlaneseq
        %v426 = vshrl.u32 %v425, 7
        %v427 = vsub.s32 %v424, %v426
        %v428 = vrot.slane %v414, %v427
        %v429 = vcombine.high %v405, 0
        %v431 = vunpack.c.l.s4 1983009808
        %v432 = vunpack.c.0.s8 %v431
        %v433 = vlaneseq
        %v434 = vshrl.u32 %v433, 7
        %v435 = vsub.s32 %v432, %v434
        %v436 = vrot.slane %v405, %v435
        %v438 = vunpack.c.l.s4 1983009808
        %v439 = vunpack.c.0.s8 %v438
        %v440 = vlaneseq
        %v441 = vshrl.u32 %v440, 7
        %v442 = vsub.s32 %v439, %v441
        %v443 = vrot.slane %v429, %v442
        %v444 = vcombine.low %v421, %v436
        %v445 = vcombine.high %v421, %v436
        %v447 = vunpack.c.l.s4 1934713408
        %v448 = vunpack.c.0.s8 %v447
        %v449 = vlaneseq
        %v450 = vshrl.u32 %v449, 7
        %v451 = vsub.s32 %v448, %v450
        %v452 = vrot.slane %v444, %v451
        %v454 = vunpack.c.l.s4 1934713408
        %v455 = vunpack.c.0.s8 %v454
        %v456 = vlaneseq
        %v457 = vshrl.u32 %v456, 7
        %v458 = vsub.s32 %v455, %v457
        %v459 = vrot.slane %v445, %v458
        %v460 = vcombine.low %v428, %v443
        %v461 = vcombine.high %v428, %v443
        %v463 = vunpack.c.l.s4 1934713408
        %v464 = vunpack.c.0.s8 %v463
        %v465 = vlaneseq
        %v466 = vshrl.u32 %v465, 7
        %v467 = vsub.s32 %v464, %v466
        %v468 = vrot.slane %v460, %v467
        %v470 = vunpack.c.l.s4 1934713408
        %v471 = vunpack.c.0.s8 %v470
        %v472 = vlaneseq
        %v473 = vshrl.u32 %v472, 7
        %v474 = vsub.s32 %v471, %v473
        %v475 = vrot.slane %v461, %v474
        %v476 = vcombine.high %v452, 0
        %v477 = vcombine.high %v459, 0
        %v478 = vcombine.high %v468, 0
        %v479 = vcombine.high %v475, 0
        %v480 = vcombine.high %v400, 0
        %v482 = vunpack.c.l.s4 1983009808
        %v483 = vunpack.c.0.s8 %v482
        %v484 = vlaneseq
        %v485 = vshrl.u32 %v484, 7
        %v486 = vsub.s32 %v483, %v485
        %v487 = vrot.slane %v400, %v486
        %v489 = vunpack.c.l.s4 1983009808
        %v490 = vunpack.c.0.s8 %v489
        %v491 = vlaneseq
        %v492 = vshrl.u32 %v491, 7
        %v493 = vsub.s32 %v490, %v492
        %v494 = vrot.slane %v480, %v493
        %v495 = vcombine.high %v410, 0
        %v497 = vunpack.c.l.s4 1983009808
        %v498 = vunpack.c.0.s8 %v497
        %v499 = vlaneseq
        %v500 = vshrl.u32 %v499, 7
        %v501 = vsub.s32 %v498, %v500
        %v502 = vrot.slane %v410, %v501
        %v504 = vunpack.c.l.s4 1983009808
        %v505 = vunpack.c.0.s8 %v504
        %v506 = vlaneseq
        %v507 = vshrl.u32 %v506, 7
        %v508 = vsub.s32 %v505, %v507
        %v509 = vrot.slane %v495, %v508
        %v510 = vcombine.low %v487, %v502
        %v511 = vcombine.high %v487, %v502
        %v513 = vunpack.c.l.s4 1934713408
        %v514 = vunpack.c.0.s8 %v513
        %v515 = vlaneseq
        %v516 = vshrl.u32 %v515, 7
        %v517 = vsub.s32 %v514, %v516
        %v518 = vrot.slane %v510, %v517
        %v520 = vunpack.c.l.s4 1934713408
        %v521 = vunpack.c.0.s8 %v520
        %v522 = vlaneseq
        %v523 = vshrl.u32 %v522, 7
        %v524 = vsub.s32 %v521, %v523
        %v525 = vrot.slane %v511, %v524
        %v526 = vcombine.low %v494, %v509
        %v527 = vcombine.high %v494, %v509
        %v529 = vunpack.c.l.s4 1934713408
        %v530 = vunpack.c.0.s8 %v529
        %v531 = vlaneseq
        %v532 = vshrl.u32 %v531, 7
        %v533 = vsub.s32 %v530, %v532
        %v534 = vrot.slane %v526, %v533
        %v536 = vunpack.c.l.s4 1934713408
        %v537 = vunpack.c.0.s8 %v536
        %v538 = vlaneseq
        %v539 = vshrl.u32 %v538, 7
        %v540 = vsub.s32 %v537, %v539
        %v541 = vrot.slane %v527, %v540
        %v542 = vcombine.high %v518, 0
        %v543 = vcombine.high %v525, 0
        %v544 = vcombine.high %v534, 0
        %v545 = vcombine.high %v541, 0
        %v547 = vunpack.c.l.s4 1983009808
        %v548 = vunpack.c.0.s8 %v547
        %v549 = vlaneseq
        %v550 = vshrl.u32 %v549, 7
        %v551 = vsub.s32 %v548, %v550
        %v552 = vrot.slane %v396, %v551
        %v555 = vunpack.c.l.s4 1983009808
        %v556 = vunpack.c.0.s8 %v555
        %v557 = vlaneseq
        %v558 = vshrl.u32 %v557, 7
        %v559 = vsub.s32 %v556, %v558
        %v560 = vrot.slane %v407, %v559
        %v561 = vcombine.low %v552, %v560
        %v562 = vcombine.high %v552, %v560
        %v564 = vunpack.c.l.s4 1934713408
        %v565 = vunpack.c.0.s8 %v564
        %v566 = vlaneseq
        %v567 = vshrl.u32 %v566, 7
        %v568 = vsub.s32 %v565, %v567
        %v569 = vrot.slane %v561, %v568
        %v571 = vunpack.c.l.s4 1934713408
        %v572 = vunpack.c.0.s8 %v571
        %v573 = vlaneseq
        %v574 = vshrl.u32 %v573, 7
        %v575 = vsub.s32 %v572, %v574
        %v576 = vrot.slane %v562, %v575
        %v577 = vcombine.high %v569, 0
        %v578 = vcombine.high %v576, 0
        %v581 = vunpack.c.l.s4 1983009808
        %v582 = vunpack.c.0.s8 %v581
        %v583 = vlaneseq
        %v584 = vshrl.u32 %v583, 7
        %v585 = vsub.s32 %v582, %v584
        %v586 = vrot.slane %v402, %v585
        %v589 = vunpack.c.l.s4 1983009808
        %v590 = vunpack.c.0.s8 %v589
        %v591 = vlaneseq
        %v592 = vshrl.u32 %v591, 7
        %v593 = vsub.s32 %v590, %v592
        %v594 = vrot.slane %v412, %v593
        %v595 = vcombine.low %v586, %v594
        %v596 = vcombine.high %v586, %v594
        %v598 = vunpack.c.l.s4 1934713408
        %v599 = vunpack.c.0.s8 %v598
        %v600 = vlaneseq
        %v601 = vshrl.u32 %v600, 7
        %v602 = vsub.s32 %v599, %v601
        %v603 = vrot.slane %v595, %v602
        %v605 = vunpack.c.l.s4 1934713408
        %v606 = vunpack.c.0.s8 %v605
        %v607 = vlaneseq
        %v608 = vshrl.u32 %v607, 7
        %v609 = vsub.s32 %v606, %v608
        %v610 = vrot.slane %v596, %v609
        %v611 = vcombine.high %v603, 0
        %v612 = vcombine.high %v610, 0
        %v615 = vpack.i.b16 %v518, %v452
        %v617 = vshrl.u32 %v452, 16
        %v618 = vshrl.u32 %v518, 16
        %v619 = vpack.i.b16 %v618, %v617
        %v623 = vpack.i.b16 %v542, %v476
        %v625 = vshrl.u32 %v476, 16
        %v626 = vshrl.u32 %v542, 16
        %v627 = vpack.i.b16 %v626, %v625
        %v631 = vpack.i.b16 %v525, %v459
        %v633 = vshrl.u32 %v459, 16
        %v634 = vshrl.u32 %v525, 16
        %v635 = vpack.i.b16 %v634, %v633
        %v639 = vpack.i.b16 %v543, %v477
        %v641 = vshrl.u32 %v477, 16
        %v642 = vshrl.u32 %v543, 16
        %v643 = vpack.i.b16 %v642, %v641
        %v647 = vpack.i.b16 %v534, %v468
        %v649 = vshrl.u32 %v468, 16
        %v650 = vshrl.u32 %v534, 16
        %v651 = vpack.i.b16 %v650, %v649
        %v655 = vpack.i.b16 %v544, %v478
        %v657 = vshrl.u32 %v478, 16
        %v658 = vshrl.u32 %v544, 16
        %v659 = vpack.i.b16 %v658, %v657
        %v663 = vpack.i.b16 %v541, %v475
        %v665 = vshrl.u32 %v475, 16
        %v666 = vshrl.u32 %v541, 16
        %v667 = vpack.i.b16 %v666, %v665
        %v671 = vpack.i.b16 %v545, %v479
        %v673 = vshrl.u32 %v479, 16
        %v674 = vshrl.u32 %v545, 16
        %v675 = vpack.i.b16 %v674, %v673
        %v679 = vpack.i.b16 %v603, %v569
        %v681 = vshrl.u32 %v569, 16
        %v682 = vshrl.u32 %v603, 16
        %v683 = vpack.i.b16 %v682, %v681
        %v687 = vpack.i.b16 %v611, %v577
        %v689 = vshrl.u32 %v577, 16
        %v690 = vshrl.u32 %v611, 16
        %v691 = vpack.i.b16 %v690, %v689
        %v695 = vpack.i.b16 %v610, %v576
        %v697 = vshrl.u32 %v576, 16
        %v698 = vshrl.u32 %v610, 16
        %v699 = vpack.i.b16 %v698, %v697
        %v703 = vpack.i.b16 %v612, %v578
        %v705 = vshrl.u32 %v578, 16
        %v706 = vshrl.u32 %v612, 16
        %v707 = vpack.i.b16 %v706, %v705
        %v709 = vcombine.low %v615, %v631
        %v711 = vunpack.c.l.s4 1983009808
        %v712 = vunpack.c.0.s8 %v711
        %v713 = vlaneseq
        %v714 = vshrl.u32 %v713, 7
        %v715 = vsub.s32 %v712, %v714
        %v716 = vrot.slane %v709, %v715
        %v717 = vcombine.low %v623, %v639
        %v719 = vunpack.c.l.s4 1983009808
        %v720 = vunpack.c.0.s8 %v719
        %v721 = vlaneseq
        %v722 = vshrl.u32 %v721, 7
        %v723 = vsub.s32 %v720, %v722
        %v724 = vrot.slane %v717, %v723
        %v725 = vcombine.low %v647, %v663
        %v727 = vunpack.c.l.s4 1983009808
        %v728 = vunpack.c.0.s8 %v727
        %v729 = vlaneseq
        %v730 = vshrl.u32 %v729, 7
        %v731 = vsub.s32 %v728, %v730
        %v732 = vrot.slane %v725, %v731
        %v733 = vcombine.low %v655, %v671
        %v735 = vunpack.c.l.s4 1983009808
        %v736 = vunpack.c.0.s8 %v735
        %v737 = vlaneseq
        %v738 = vshrl.u32 %v737, 7
        %v739 = vsub.s32 %v736, %v738
        %v740 = vrot.slane %v733, %v739
        %v741 = vcombine.low %v716, %v724
        %v743 = vunpack.c.l.s4 1934713408
        %v744 = vunpack.c.0.s8 %v743
        %v745 = vlaneseq
        %v746 = vshrl.u32 %v745, 7
        %v747 = vsub.s32 %v744, %v746
        %v748 = vrot.slane %v741, %v747
        %v749 = vcombine.low %v732, %v740
        %v751 = vunpack.c.l.s4 1934713408
        %v752 = vunpack.c.0.s8 %v751
        %v753 = vlaneseq
        %v754 = vshrl.u32 %v753, 7
        %v755 = vsub.s32 %v752, %v754
        %v756 = vrot.slane %v749, %v755
        %v757 = vcombine.low %v748, %v756
        %v758 = vcombine.high %v748, %v756
        %v759 = vcombine.low %v619, %v635
        %v761 = vunpack.c.l.s4 1983009808
        %v762 = vunpack.c.0.s8 %v761
        %v763 = vlaneseq
        %v764 = vshrl.u32 %v763, 7
        %v765 = vsub.s32 %v762, %v764
        %v766 = vrot.slane %v759, %v765
        %v767 = vcombine.low %v627, %v643
        %v769 = vunpack.c.l.s4 1983009808
        %v770 = vunpack.c.0.s8 %v769
        %v771 = vlaneseq
        %v772 = vshrl.u32 %v771, 7
        %v773 = vsub.s32 %v770, %v772
        %v774 = vrot.slane %v767, %v773
        %v775 = vcombine.low %v651, %v667
        %v777 = vunpack.c.l.s4 1983009808
        %v778 = vunpack.c.0.s8 %v777
        %v779 = vlaneseq
        %v780 = vshrl.u32 %v779, 7
        %v781 = vsub.s32 %v778, %v780
        %v782 = vrot.slane %v775, %v781
        %v783 = vcombine.low %v659, %v675
        %v785 = vunpack.c.l.s4 1983009808
        %v786 = vunpack.c.0.s8 %v785
        %v787 = vlaneseq
        %v788 = vshrl.u32 %v787, 7
        %v789 = vsub.s32 %v786, %v788
        %v790 = vrot.slane %v783, %v789
        %v791 = vcombine.low %v766, %v774
        %v793 = vunpack.c.l.s4 1934713408
        %v794 = vunpack.c.0.s8 %v793
        %v795 = vlaneseq
        %v796 = vshrl.u32 %v795, 7
        %v797 = vsub.s32 %v794, %v796
        %v798 = vrot.slane %v791, %v797
        %v799 = vcombine.low %v782, %v790
        %v801 = vunpack.c.l.s4 1934713408
        %v802 = vunpack.c.0.s8 %v801
        %v803 = vlaneseq
        %v804 = vshrl.u32 %v803, 7
        %v805 = vsub.s32 %v802, %v804
        %v806 = vrot.slane %v799, %v805
        %v807 = vcombine.low %v798, %v806
        %v808 = vcombine.high %v798, %v806
        %v809 = vcombine.low %v679, %v695
        %v811 = vunpack.c.l.s4 1983009808
        %v812 = vunpack.c.0.s8 %v811
        %v813 = vlaneseq
        %v814 = vshrl.u32 %v813, 7
        %v815 = vsub.s32 %v812, %v814
        %v816 = vrot.slane %v809, %v815
        %v817 = vcombine.low %v687, %v703
        %v819 = vunpack.c.l.s4 1983009808
        %v820 = vunpack.c.0.s8 %v819
        %v821 = vlaneseq
        %v822 = vshrl.u32 %v821, 7
        %v823 = vsub.s32 %v820, %v822
        %v824 = vrot.slane %v817, %v823
        %v825 = vcombine.low %v816, %v824
        %v827 = vunpack.c.l.s4 1934713408
        %v828 = vunpack.c.0.s8 %v827
        %v829 = vlaneseq
        %v830 = vshrl.u32 %v829, 7
        %v831 = vsub.s32 %v828, %v830
        %v832 = vrot.slane %v825, %v831
        %v833 = vcombine.high %v832, 0
        %v834 = vcombine.low %v683, %v699
        %v836 = vunpack.c.l.s4 1983009808
        %v837 = vunpack.c.0.s8 %v836
        %v838 = vlaneseq
        %v839 = vshrl.u32 %v838, 7
        %v840 = vsub.s32 %v837, %v839
        %v841 = vrot.slane %v834, %v840
        %v842 = vcombine.low %v691, %v707
        %v844 = vunpack.c.l.s4 1983009808
        %v845 = vunpack.c.0.s8 %v844
        %v846 = vlaneseq
        %v847 = vshrl.u32 %v846, 7
        %v848 = vsub.s32 %v845, %v847
        %v849 = vrot.slane %v842, %v848
        %v850 = vcombine.low %v841, %v849
        %v852 = vunpack.c.l.s4 1934713408
        %v853 = vunpack.c.0.s8 %v852
        %v854 = vlaneseq
        %v855 = vshrl.u32 %v854, 7
        %v856 = vsub.s32 %v853, %v855
        %v857 = vrot.slane %v850, %v856
        %v858 = vcombine.high %v857, 0
        %v861 = vpack.i.b16 %v807, %v757
        %v862 = vshrl.u32 %v757, 16
        %v863 = vshrl.u32 %v807, 16
        %v864 = vpack.i.b16 %v863, %v862
        %v867 = vpack.i.b16 %v808, %v758
        %v868 = vshrl.u32 %v758, 16
        %v869 = vshrl.u32 %v808, 16
        %v870 = vpack.i.b16 %v869, %v868
        %v873 = vpack.i.b16 %v857, %v832
        %v874 = vshrl.u32 %v832, 16
        %v875 = vshrl.u32 %v857, 16
        %v876 = vpack.i.b16 %v875, %v874
        %v879 = vpack.i.b16 %v858, %v833
        %v880 = vshrl.u32 %v833, 16
        %v881 = vshrl.u32 %v858, 16
        %v882 = vpack.i.b16 %v881, %v880
        %883 = vrot.lane.b32.xlu0 %v395, 96
        %v884 = vpop.permute.xlu0 %883
        %885 = vrot.lane.b32.xlu0 %v396, 96
        %v886 = vpop.permute.xlu0 %885
        %887 = vrot.lane.b32.xlu0 %v400, 96
        %v888 = vpop.permute.xlu0 %887
        %889 = vrot.lane.b32.xlu0 %v402, 96
        %v890 = vpop.permute.xlu0 %889
        %891 = vrot.lane.b32.xlu0 %v405, 96
        %v892 = vpop.permute.xlu0 %891
        %893 = vrot.lane.b32.xlu0 %v407, 96
        %v894 = vpop.permute.xlu0 %893
        %895 = vrot.lane.b32.xlu0 %v410, 96
        %v896 = vpop.permute.xlu0 %895
        %897 = vrot.lane.b32.xlu0 %v412, 96
        %v898 = vpop.permute.xlu0 %897
        %v903 = vcombine.high %v884, 0
        %v905 = vunpack.c.l.s4 1983009808
        %v906 = vunpack.c.0.s8 %v905
        %v907 = vlaneseq
        %v908 = vshrl.u32 %v907, 7
        %v909 = vsub.s32 %v906, %v908
        %v910 = vrot.slane %v884, %v909
        %v912 = vunpack.c.l.s4 1983009808
        %v913 = vunpack.c.0.s8 %v912
        %v914 = vlaneseq
        %v915 = vshrl.u32 %v914, 7
        %v916 = vsub.s32 %v913, %v915
        %v917 = vrot.slane %v903, %v916
        %v918 = vcombine.high %v892, 0
        %v920 = vunpack.c.l.s4 1983009808
        %v921 = vunpack.c.0.s8 %v920
        %v922 = vlaneseq
        %v923 = vshrl.u32 %v922, 7
        %v924 = vsub.s32 %v921, %v923
        %v925 = vrot.slane %v892, %v924
        %v927 = vunpack.c.l.s4 1983009808
        %v928 = vunpack.c.0.s8 %v927
        %v929 = vlaneseq
        %v930 = vshrl.u32 %v929, 7
        %v931 = vsub.s32 %v928, %v930
        %v932 = vrot.slane %v918, %v931
        %v933 = vcombine.low %v910, %v925
        %v934 = vcombine.high %v910, %v925
        %v936 = vunpack.c.l.s4 1934713408
        %v937 = vunpack.c.0.s8 %v936
        %v938 = vlaneseq
        %v939 = vshrl.u32 %v938, 7
        %v940 = vsub.s32 %v937, %v939
        %v941 = vrot.slane %v933, %v940
        %v943 = vunpack.c.l.s4 1934713408
        %v944 = vunpack.c.0.s8 %v943
        %v945 = vlaneseq
        %v946 = vshrl.u32 %v945, 7
        %v947 = vsub.s32 %v944, %v946
        %v948 = vrot.slane %v934, %v947
        %v949 = vcombine.low %v917, %v932
        %v950 = vcombine.high %v917, %v932
        %v952 = vunpack.c.l.s4 1934713408
        %v953 = vunpack.c.0.s8 %v952
        %v954 = vlaneseq
        %v955 = vshrl.u32 %v954, 7
        %v956 = vsub.s32 %v953, %v955
        %v957 = vrot.slane %v949, %v956
        %v959 = vunpack.c.l.s4 1934713408
        %v960 = vunpack.c.0.s8 %v959
        %v961 = vlaneseq
        %v962 = vshrl.u32 %v961, 7
        %v963 = vsub.s32 %v960, %v962
        %v964 = vrot.slane %v950, %v963
        %v965 = vcombine.high %v941, 0
        %v966 = vcombine.high %v948, 0
        %v967 = vcombine.high %v957, 0
        %v968 = vcombine.high %v964, 0
        %v969 = vcombine.high %v888, 0
        %v971 = vunpack.c.l.s4 1983009808
        %v972 = vunpack.c.0.s8 %v971
        %v973 = vlaneseq
        %v974 = vshrl.u32 %v973, 7
        %v975 = vsub.s32 %v972, %v974
        %v976 = vrot.slane %v888, %v975
        %v978 = vunpack.c.l.s4 1983009808
        %v979 = vunpack.c.0.s8 %v978
        %v980 = vlaneseq
        %v981 = vshrl.u32 %v980, 7
        %v982 = vsub.s32 %v979, %v981
        %v983 = vrot.slane %v969, %v982
        %v984 = vcombine.high %v896, 0
        %v986 = vunpack.c.l.s4 1983009808
        %v987 = vunpack.c.0.s8 %v986
        %v988 = vlaneseq
        %v989 = vshrl.u32 %v988, 7
        %v990 = vsub.s32 %v987, %v989
        %v991 = vrot.slane %v896, %v990
        %v993 = vunpack.c.l.s4 1983009808
        %v994 = vunpack.c.0.s8 %v993
        %v995 = vlaneseq
        %v996 = vshrl.u32 %v995, 7
        %v997 = vsub.s32 %v994, %v996
        %v998 = vrot.slane %v984, %v997
        %v999 = vcombine.low %v976, %v991
        %v1000 = vcombine.high %v976, %v991
        %v1002 = vunpack.c.l.s4 1934713408
        %v1003 = vunpack.c.0.s8 %v1002
        %v1004 = vlaneseq
        %v1005 = vshrl.u32 %v1004, 7
        %v1006 = vsub.s32 %v1003, %v1005
        %v1007 = vrot.slane %v999, %v1006
        %v1009 = vunpack.c.l.s4 1934713408
        %v1010 = vunpack.c.0.s8 %v1009
        %v1011 = vlaneseq
        %v1012 = vshrl.u32 %v1011, 7
        %v1013 = vsub.s32 %v1010, %v1012
        %v1014 = vrot.slane %v1000, %v1013
        %v1015 = vcombine.low %v983, %v998
        %v1016 = vcombine.high %v983, %v998
        %v1018 = vunpack.c.l.s4 1934713408
        %v1019 = vunpack.c.0.s8 %v1018
        %v1020 = vlaneseq
        %v1021 = vshrl.u32 %v1020, 7
        %v1022 = vsub.s32 %v1019, %v1021
        %v1023 = vrot.slane %v1015, %v1022
        %v1025 = vunpack.c.l.s4 1934713408
        %v1026 = vunpack.c.0.s8 %v1025
        %v1027 = vlaneseq
        %v1028 = vshrl.u32 %v1027, 7
        %v1029 = vsub.s32 %v1026, %v1028
        %v1030 = vrot.slane %v1016, %v1029
        %v1031 = vcombine.high %v1007, 0
        %v1032 = vcombine.high %v1014, 0
        %v1033 = vcombine.high %v1023, 0
        %v1034 = vcombine.high %v1030, 0
        %v1037 = vunpack.c.l.s4 1983009808
        %v1038 = vunpack.c.0.s8 %v1037
        %v1039 = vlaneseq
        %v1040 = vshrl.u32 %v1039, 7
        %v1041 = vsub.s32 %v1038, %v1040
        %v1042 = vrot.slane %v886, %v1041
        %v1045 = vunpack.c.l.s4 1983009808
        %v1046 = vunpack.c.0.s8 %v1045
        %v1047 = vlaneseq
        %v1048 = vshrl.u32 %v1047, 7
        %v1049 = vsub.s32 %v1046, %v1048
        %v1050 = vrot.slane %v894, %v1049
        %v1051 = vcombine.low %v1042, %v1050
        %v1052 = vcombine.high %v1042, %v1050
        %v1054 = vunpack.c.l.s4 1934713408
        %v1055 = vunpack.c.0.s8 %v1054
        %v1056 = vlaneseq
        %v1057 = vshrl.u32 %v1056, 7
        %v1058 = vsub.s32 %v1055, %v1057
        %v1059 = vrot.slane %v1051, %v1058
        %v1061 = vunpack.c.l.s4 1934713408
        %v1062 = vunpack.c.0.s8 %v1061
        %v1063 = vlaneseq
        %v1064 = vshrl.u32 %v1063, 7
        %v1065 = vsub.s32 %v1062, %v1064
        %v1066 = vrot.slane %v1052, %v1065
        %v1067 = vcombine.high %v1059, 0
        %v1068 = vcombine.high %v1066, 0
        %v1071 = vunpack.c.l.s4 1983009808
        %v1072 = vunpack.c.0.s8 %v1071
        %v1073 = vlaneseq
        %v1074 = vshrl.u32 %v1073, 7
        %v1075 = vsub.s32 %v1072, %v1074
        %v1076 = vrot.slane %v890, %v1075
        %v1079 = vunpack.c.l.s4 1983009808
        %v1080 = vunpack.c.0.s8 %v1079
        %v1081 = vlaneseq
        %v1082 = vshrl.u32 %v1081, 7
        %v1083 = vsub.s32 %v1080, %v1082
        %v1084 = vrot.slane %v898, %v1083
        %v1085 = vcombine.low %v1076, %v1084
        %v1086 = vcombine.high %v1076, %v1084
        %v1088 = vunpack.c.l.s4 1934713408
        %v1089 = vunpack.c.0.s8 %v1088
        %v1090 = vlaneseq
        %v1091 = vshrl.u32 %v1090, 7
        %v1092 = vsub.s32 %v1089, %v1091
        %v1093 = vrot.slane %v1085, %v1092
        %v1095 = vunpack.c.l.s4 1934713408
        %v1096 = vunpack.c.0.s8 %v1095
        %v1097 = vlaneseq
        %v1098 = vshrl.u32 %v1097, 7
        %v1099 = vsub.s32 %v1096, %v1098
        %v1100 = vrot.slane %v1086, %v1099
        %v1101 = vcombine.high %v1093, 0
        %v1102 = vcombine.high %v1100, 0
        %v1105 = vpack.i.b16 %v1007, %v941
        %v1107 = vshrl.u32 %v941, 16
        %v1108 = vshrl.u32 %v1007, 16
        %v1109 = vpack.i.b16 %v1108, %v1107
        %v1113 = vpack.i.b16 %v1031, %v965
        %v1115 = vshrl.u32 %v965, 16
        %v1116 = vshrl.u32 %v1031, 16
        %v1117 = vpack.i.b16 %v1116, %v1115
        %v1121 = vpack.i.b16 %v1014, %v948
        %v1123 = vshrl.u32 %v948, 16
        %v1124 = vshrl.u32 %v1014, 16
        %v1125 = vpack.i.b16 %v1124, %v1123
        %v1129 = vpack.i.b16 %v1032, %v966
        %v1131 = vshrl.u32 %v966, 16
        %v1132 = vshrl.u32 %v1032, 16
        %v1133 = vpack.i.b16 %v1132, %v1131
        %v1137 = vpack.i.b16 %v1023, %v957
        %v1139 = vshrl.u32 %v957, 16
        %v1140 = vshrl.u32 %v1023, 16
        %v1141 = vpack.i.b16 %v1140, %v1139
        %v1145 = vpack.i.b16 %v1033, %v967
        %v1147 = vshrl.u32 %v967, 16
        %v1148 = vshrl.u32 %v1033, 16
        %v1149 = vpack.i.b16 %v1148, %v1147
        %v1153 = vpack.i.b16 %v1030, %v964
        %v1155 = vshrl.u32 %v964, 16
        %v1156 = vshrl.u32 %v1030, 16
        %v1157 = vpack.i.b16 %v1156, %v1155
        %v1161 = vpack.i.b16 %v1034, %v968
        %v1163 = vshrl.u32 %v968, 16
        %v1164 = vshrl.u32 %v1034, 16
        %v1165 = vpack.i.b16 %v1164, %v1163
        %v1169 = vpack.i.b16 %v1093, %v1059
        %v1171 = vshrl.u32 %v1059, 16
        %v1172 = vshrl.u32 %v1093, 16
        %v1173 = vpack.i.b16 %v1172, %v1171
        %v1177 = vpack.i.b16 %v1101, %v1067
        %v1179 = vshrl.u32 %v1067, 16
        %v1180 = vshrl.u32 %v1101, 16
        %v1181 = vpack.i.b16 %v1180, %v1179
        %v1185 = vpack.i.b16 %v1100, %v1066
        %v1187 = vshrl.u32 %v1066, 16
        %v1188 = vshrl.u32 %v1100, 16
        %v1189 = vpack.i.b16 %v1188, %v1187
        %v1193 = vpack.i.b16 %v1102, %v1068
        %v1195 = vshrl.u32 %v1068, 16
        %v1196 = vshrl.u32 %v1102, 16
        %v1197 = vpack.i.b16 %v1196, %v1195
        %v1199 = vcombine.low %v1105, %v1121
        %v1201 = vunpack.c.l.s4 1983009808
        %v1202 = vunpack.c.0.s8 %v1201
        %v1203 = vlaneseq
        %v1204 = vshrl.u32 %v1203, 7
        %v1205 = vsub.s32 %v1202, %v1204
        %v1206 = vrot.slane %v1199, %v1205
        %v1207 = vcombine.low %v1113, %v1129
        %v1209 = vunpack.c.l.s4 1983009808
        %v1210 = vunpack.c.0.s8 %v1209
        %v1211 = vlaneseq
        %v1212 = vshrl.u32 %v1211, 7
        %v1213 = vsub.s32 %v1210, %v1212
        %v1214 = vrot.slane %v1207, %v1213
        %v1215 = vcombine.low %v1137, %v1153
        %v1217 = vunpack.c.l.s4 1983009808
        %v1218 = vunpack.c.0.s8 %v1217
        %v1219 = vlaneseq
        %v1220 = vshrl.u32 %v1219, 7
        %v1221 = vsub.s32 %v1218, %v1220
        %v1222 = vrot.slane %v1215, %v1221
        %v1223 = vcombine.low %v1145, %v1161
        %v1225 = vunpack.c.l.s4 1983009808
        %v1226 = vunpack.c.0.s8 %v1225
        %v1227 = vlaneseq
        %v1228 = vshrl.u32 %v1227, 7
        %v1229 = vsub.s32 %v1226, %v1228
        %v1230 = vrot.slane %v1223, %v1229
        %v1231 = vcombine.low %v1206, %v1214
        %v1233 = vunpack.c.l.s4 1934713408
        %v1234 = vunpack.c.0.s8 %v1233
        %v1235 = vlaneseq
        %v1236 = vshrl.u32 %v1235, 7
        %v1237 = vsub.s32 %v1234, %v1236
        %v1238 = vrot.slane %v1231, %v1237
        %v1239 = vcombine.low %v1222, %v1230
        %v1241 = vunpack.c.l.s4 1934713408
        %v1242 = vunpack.c.0.s8 %v1241
        %v1243 = vlaneseq
        %v1244 = vshrl.u32 %v1243, 7
        %v1245 = vsub.s32 %v1242, %v1244
        %v1246 = vrot.slane %v1239, %v1245
        %v1247 = vcombine.low %v1238, %v1246
        %v1248 = vcombine.high %v1238, %v1246
        %v1249 = vcombine.low %v1109, %v1125
        %v1251 = vunpack.c.l.s4 1983009808
        %v1252 = vunpack.c.0.s8 %v1251
        %v1253 = vlaneseq
        %v1254 = vshrl.u32 %v1253, 7
        %v1255 = vsub.s32 %v1252, %v1254
        %v1256 = vrot.slane %v1249, %v1255
        %v1257 = vcombine.low %v1117, %v1133
        %v1259 = vunpack.c.l.s4 1983009808
        %v1260 = vunpack.c.0.s8 %v1259
        %v1261 = vlaneseq
        %v1262 = vshrl.u32 %v1261, 7
        %v1263 = vsub.s32 %v1260, %v1262
        %v1264 = vrot.slane %v1257, %v1263
        %v1265 = vcombine.low %v1141, %v1157
        %v1267 = vunpack.c.l.s4 1983009808
        %v1268 = vunpack.c.0.s8 %v1267
        %v1269 = vlaneseq
        %v1270 = vshrl.u32 %v1269, 7
        %v1271 = vsub.s32 %v1268, %v1270
        %v1272 = vrot.slane %v1265, %v1271
        %v1273 = vcombine.low %v1149, %v1165
        %v1275 = vunpack.c.l.s4 1983009808
        %v1276 = vunpack.c.0.s8 %v1275
        %v1277 = vlaneseq
        %v1278 = vshrl.u32 %v1277, 7
        %v1279 = vsub.s32 %v1276, %v1278
        %v1280 = vrot.slane %v1273, %v1279
        %v1281 = vcombine.low %v1256, %v1264
        %v1283 = vunpack.c.l.s4 1934713408
        %v1284 = vunpack.c.0.s8 %v1283
        %v1285 = vlaneseq
        %v1286 = vshrl.u32 %v1285, 7
        %v1287 = vsub.s32 %v1284, %v1286
        %v1288 = vrot.slane %v1281, %v1287
        %v1289 = vcombine.low %v1272, %v1280
        %v1291 = vunpack.c.l.s4 1934713408
        %v1292 = vunpack.c.0.s8 %v1291
        %v1293 = vlaneseq
        %v1294 = vshrl.u32 %v1293, 7
        %v1295 = vsub.s32 %v1292, %v1294
        %v1296 = vrot.slane %v1289, %v1295
        %v1297 = vcombine.low %v1288, %v1296
        %v1298 = vcombine.high %v1288, %v1296
        %v1299 = vcombine.low %v1169, %v1185
        %v1301 = vunpack.c.l.s4 1983009808
        %v1302 = vunpack.c.0.s8 %v1301
        %v1303 = vlaneseq
        %v1304 = vshrl.u32 %v1303, 7
        %v1305 = vsub.s32 %v1302, %v1304
        %v1306 = vrot.slane %v1299, %v1305
        %v1307 = vcombine.low %v1177, %v1193
        %v1309 = vunpack.c.l.s4 1983009808
        %v1310 = vunpack.c.0.s8 %v1309
        %v1311 = vlaneseq
        %v1312 = vshrl.u32 %v1311, 7
        %v1313 = vsub.s32 %v1310, %v1312
        %v1314 = vrot.slane %v1307, %v1313
        %v1315 = vcombine.low %v1306, %v1314
        %v1317 = vunpack.c.l.s4 1934713408
        %v1318 = vunpack.c.0.s8 %v1317
        %v1319 = vlaneseq
        %v1320 = vshrl.u32 %v1319, 7
        %v1321 = vsub.s32 %v1318, %v1320
        %v1322 = vrot.slane %v1315, %v1321
        %v1323 = vcombine.high %v1322, 0
        %v1324 = vcombine.low %v1173, %v1189
        %v1326 = vunpack.c.l.s4 1983009808
        %v1327 = vunpack.c.0.s8 %v1326
        %v1328 = vlaneseq
        %v1329 = vshrl.u32 %v1328, 7
        %v1330 = vsub.s32 %v1327, %v1329
        %v1331 = vrot.slane %v1324, %v1330
        %v1332 = vcombine.low %v1181, %v1197
        %v1334 = vunpack.c.l.s4 1983009808
        %v1335 = vunpack.c.0.s8 %v1334
        %v1336 = vlaneseq
        %v1337 = vshrl.u32 %v1336, 7
        %v1338 = vsub.s32 %v1335, %v1337
        %v1339 = vrot.slane %v1332, %v1338
        %v1340 = vcombine.low %v1331, %v1339
        %v1342 = vunpack.c.l.s4 1934713408
        %v1343 = vunpack.c.0.s8 %v1342
        %v1344 = vlaneseq
        %v1345 = vshrl.u32 %v1344, 7
        %v1346 = vsub.s32 %v1343, %v1345
        %v1347 = vrot.slane %v1340, %v1346
        %v1348 = vcombine.high %v1347, 0
        %v1351 = vpack.i.b16 %v1297, %v1247
        %v1352 = vshrl.u32 %v1247, 16
        %v1353 = vshrl.u32 %v1297, 16
        %v1354 = vpack.i.b16 %v1353, %v1352
        %v1357 = vpack.i.b16 %v1298, %v1248
        %v1358 = vshrl.u32 %v1248, 16
        %v1359 = vshrl.u32 %v1298, 16
        %v1360 = vpack.i.b16 %v1359, %v1358
        %v1363 = vpack.i.b16 %v1347, %v1322
        %v1364 = vshrl.u32 %v1322, 16
        %v1365 = vshrl.u32 %v1347, 16
        %v1366 = vpack.i.b16 %v1365, %v1364
        %v1369 = vpack.i.b16 %v1348, %v1323
        %v1370 = vshrl.u32 %v1323, 16
        %v1371 = vshrl.u32 %v1348, 16
        %v1372 = vpack.i.b16 %v1371, %v1370
        %1373 = vrot.lane.b32.xlu0 %v395, 64
        %v1374 = vpop.permute.xlu0 %1373
        %1375 = vrot.lane.b32.xlu0 %v396, 64
        %v1376 = vpop.permute.xlu0 %1375
        %1377 = vrot.lane.b32.xlu0 %v400, 64
        %v1378 = vpop.permute.xlu0 %1377
        %1379 = vrot.lane.b32.xlu0 %v402, 64
        %v1380 = vpop.permute.xlu0 %1379
        %1381 = vrot.lane.b32.xlu0 %v405, 64
        %v1382 = vpop.permute.xlu0 %1381
        %1383 = vrot.lane.b32.xlu0 %v407, 64
        %v1384 = vpop.permute.xlu0 %1383
        %1385 = vrot.lane.b32.xlu0 %v410, 64
        %v1386 = vpop.permute.xlu0 %1385
        %1387 = vrot.lane.b32.xlu0 %v412, 64
        %v1388 = vpop.permute.xlu0 %1387
        %v1393 = vcombine.high %v1374, 0
        %v1395 = vunpack.c.l.s4 1983009808
        %v1396 = vunpack.c.0.s8 %v1395
        %v1397 = vlaneseq
        %v1398 = vshrl.u32 %v1397, 7
        %v1399 = vsub.s32 %v1396, %v1398
        %v1400 = vrot.slane %v1374, %v1399
        %v1402 = vunpack.c.l.s4 1983009808
        %v1403 = vunpack.c.0.s8 %v1402
        %v1404 = vlaneseq
        %v1405 = vshrl.u32 %v1404, 7
        %v1406 = vsub.s32 %v1403, %v1405
        %v1407 = vrot.slane %v1393, %v1406
        %v1408 = vcombine.high %v1382, 0
        %v1410 = vunpack.c.l.s4 1983009808
        %v1411 = vunpack.c.0.s8 %v1410
        %v1412 = vlaneseq
        %v1413 = vshrl.u32 %v1412, 7
        %v1414 = vsub.s32 %v1411, %v1413
        %v1415 = vrot.slane %v1382, %v1414
        %v1417 = vunpack.c.l.s4 1983009808
        %v1418 = vunpack.c.0.s8 %v1417
        %v1419 = vlaneseq
        %v1420 = vshrl.u32 %v1419, 7
        %v1421 = vsub.s32 %v1418, %v1420
        %v1422 = vrot.slane %v1408, %v1421
        %v1423 = vcombine.low %v1400, %v1415
        %v1424 = vcombine.high %v1400, %v1415
        %v1426 = vunpack.c.l.s4 1934713408
        %v1427 = vunpack.c.0.s8 %v1426
        %v1428 = vlaneseq
        %v1429 = vshrl.u32 %v1428, 7
        %v1430 = vsub.s32 %v1427, %v1429
        %v1431 = vrot.slane %v1423, %v1430
        %v1433 = vunpack.c.l.s4 1934713408
        %v1434 = vunpack.c.0.s8 %v1433
        %v1435 = vlaneseq
        %v1436 = vshrl.u32 %v1435, 7
        %v1437 = vsub.s32 %v1434, %v1436
        %v1438 = vrot.slane %v1424, %v1437
        %v1439 = vcombine.low %v1407, %v1422
        %v1440 = vcombine.high %v1407, %v1422
        %v1442 = vunpack.c.l.s4 1934713408
        %v1443 = vunpack.c.0.s8 %v1442
        %v1444 = vlaneseq
        %v1445 = vshrl.u32 %v1444, 7
        %v1446 = vsub.s32 %v1443, %v1445
        %v1447 = vrot.slane %v1439, %v1446
        %v1449 = vunpack.c.l.s4 1934713408
        %v1450 = vunpack.c.0.s8 %v1449
        %v1451 = vlaneseq
        %v1452 = vshrl.u32 %v1451, 7
        %v1453 = vsub.s32 %v1450, %v1452
        %v1454 = vrot.slane %v1440, %v1453
        %v1455 = vcombine.high %v1431, 0
        %v1456 = vcombine.high %v1438, 0
        %v1457 = vcombine.high %v1447, 0
        %v1458 = vcombine.high %v1454, 0
        %v1459 = vcombine.high %v1378, 0
        %v1461 = vunpack.c.l.s4 1983009808
        %v1462 = vunpack.c.0.s8 %v1461
        %v1463 = vlaneseq
        %v1464 = vshrl.u32 %v1463, 7
        %v1465 = vsub.s32 %v1462, %v1464
        %v1466 = vrot.slane %v1378, %v1465
        %v1468 = vunpack.c.l.s4 1983009808
        %v1469 = vunpack.c.0.s8 %v1468
        %v1470 = vlaneseq
        %v1471 = vshrl.u32 %v1470, 7
        %v1472 = vsub.s32 %v1469, %v1471
        %v1473 = vrot.slane %v1459, %v1472
        %v1474 = vcombine.high %v1386, 0
        %v1476 = vunpack.c.l.s4 1983009808
        %v1477 = vunpack.c.0.s8 %v1476
        %v1478 = vlaneseq
        %v1479 = vshrl.u32 %v1478, 7
        %v1480 = vsub.s32 %v1477, %v1479
        %v1481 = vrot.slane %v1386, %v1480
        %v1483 = vunpack.c.l.s4 1983009808
        %v1484 = vunpack.c.0.s8 %v1483
        %v1485 = vlaneseq
        %v1486 = vshrl.u32 %v1485, 7
        %v1487 = vsub.s32 %v1484, %v1486
        %v1488 = vrot.slane %v1474, %v1487
        %v1489 = vcombine.low %v1466, %v1481
        %v1490 = vcombine.high %v1466, %v1481
        %v1492 = vunpack.c.l.s4 1934713408
        %v1493 = vunpack.c.0.s8 %v1492
        %v1494 = vlaneseq
        %v1495 = vshrl.u32 %v1494, 7
        %v1496 = vsub.s32 %v1493, %v1495
        %v1497 = vrot.slane %v1489, %v1496
        %v1499 = vunpack.c.l.s4 1934713408
        %v1500 = vunpack.c.0.s8 %v1499
        %v1501 = vlaneseq
        %v1502 = vshrl.u32 %v1501, 7
        %v1503 = vsub.s32 %v1500, %v1502
        %v1504 = vrot.slane %v1490, %v1503
        %v1505 = vcombine.low %v1473, %v1488
        %v1506 = vcombine.high %v1473, %v1488
        %v1508 = vunpack.c.l.s4 1934713408
        %v1509 = vunpack.c.0.s8 %v1508
        %v1510 = vlaneseq
        %v1511 = vshrl.u32 %v1510, 7
        %v1512 = vsub.s32 %v1509, %v1511
        %v1513 = vrot.slane %v1505, %v1512
        %v1515 = vunpack.c.l.s4 1934713408
        %v1516 = vunpack.c.0.s8 %v1515
        %v1517 = vlaneseq
        %v1518 = vshrl.u32 %v1517, 7
        %v1519 = vsub.s32 %v1516, %v1518
        %v1520 = vrot.slane %v1506, %v1519
        %v1521 = vcombine.high %v1497, 0
        %v1522 = vcombine.high %v1504, 0
        %v1523 = vcombine.high %v1513, 0
        %v1524 = vcombine.high %v1520, 0
        %v1527 = vunpack.c.l.s4 1983009808
        %v1528 = vunpack.c.0.s8 %v1527
        %v1529 = vlaneseq
        %v1530 = vshrl.u32 %v1529, 7
        %v1531 = vsub.s32 %v1528, %v1530
        %v1532 = vrot.slane %v1376, %v1531
        %v1535 = vunpack.c.l.s4 1983009808
        %v1536 = vunpack.c.0.s8 %v1535
        %v1537 = vlaneseq
        %v1538 = vshrl.u32 %v1537, 7
        %v1539 = vsub.s32 %v1536, %v1538
        %v1540 = vrot.slane %v1384, %v1539
        %v1541 = vcombine.low %v1532, %v1540
        %v1542 = vcombine.high %v1532, %v1540
        %v1544 = vunpack.c.l.s4 1934713408
        %v1545 = vunpack.c.0.s8 %v1544
        %v1546 = vlaneseq
        %v1547 = vshrl.u32 %v1546, 7
        %v1548 = vsub.s32 %v1545, %v1547
        %v1549 = vrot.slane %v1541, %v1548
        %v1551 = vunpack.c.l.s4 1934713408
        %v1552 = vunpack.c.0.s8 %v1551
        %v1553 = vlaneseq
        %v1554 = vshrl.u32 %v1553, 7
        %v1555 = vsub.s32 %v1552, %v1554
        %v1556 = vrot.slane %v1542, %v1555
        %v1557 = vcombine.high %v1549, 0
        %v1558 = vcombine.high %v1556, 0
        %v1561 = vunpack.c.l.s4 1983009808
        %v1562 = vunpack.c.0.s8 %v1561
        %v1563 = vlaneseq
        %v1564 = vshrl.u32 %v1563, 7
        %v1565 = vsub.s32 %v1562, %v1564
        %v1566 = vrot.slane %v1380, %v1565
        %v1569 = vunpack.c.l.s4 1983009808
        %v1570 = vunpack.c.0.s8 %v1569
        %v1571 = vlaneseq
        %v1572 = vshrl.u32 %v1571, 7
        %v1573 = vsub.s32 %v1570, %v1572
        %v1574 = vrot.slane %v1388, %v1573
        %v1575 = vcombine.low %v1566, %v1574
        %v1576 = vcombine.high %v1566, %v1574
        %v1578 = vunpack.c.l.s4 1934713408
        %v1579 = vunpack.c.0.s8 %v1578
        %v1580 = vlaneseq
        %v1581 = vshrl.u32 %v1580, 7
        %v1582 = vsub.s32 %v1579, %v1581
        %v1583 = vrot.slane %v1575, %v1582
        %v1585 = vunpack.c.l.s4 1934713408
        %v1586 = vunpack.c.0.s8 %v1585
        %v1587 = vlaneseq
        %v1588 = vshrl.u32 %v1587, 7
        %v1589 = vsub.s32 %v1586, %v1588
        %v1590 = vrot.slane %v1576, %v1589
        %v1591 = vcombine.high %v1583, 0
        %v1592 = vcombine.high %v1590, 0
        %v1595 = vpack.i.b16 %v1497, %v1431
        %v1597 = vshrl.u32 %v1431, 16
        %v1598 = vshrl.u32 %v1497, 16
        %v1599 = vpack.i.b16 %v1598, %v1597
        %v1603 = vpack.i.b16 %v1521, %v1455
        %v1605 = vshrl.u32 %v1455, 16
        %v1606 = vshrl.u32 %v1521, 16
        %v1607 = vpack.i.b16 %v1606, %v1605
        %v1611 = vpack.i.b16 %v1504, %v1438
        %v1613 = vshrl.u32 %v1438, 16
        %v1614 = vshrl.u32 %v1504, 16
        %v1615 = vpack.i.b16 %v1614, %v1613
        %v1619 = vpack.i.b16 %v1522, %v1456
        %v1621 = vshrl.u32 %v1456, 16
        %v1622 = vshrl.u32 %v1522, 16
        %v1623 = vpack.i.b16 %v1622, %v1621
        %v1627 = vpack.i.b16 %v1513, %v1447
        %v1629 = vshrl.u32 %v1447, 16
        %v1630 = vshrl.u32 %v1513, 16
        %v1631 = vpack.i.b16 %v1630, %v1629
        %v1635 = vpack.i.b16 %v1523, %v1457
        %v1637 = vshrl.u32 %v1457, 16
        %v1638 = vshrl.u32 %v1523, 16
        %v1639 = vpack.i.b16 %v1638, %v1637
        %v1643 = vpack.i.b16 %v1520, %v1454
        %v1645 = vshrl.u32 %v1454, 16
        %v1646 = vshrl.u32 %v1520, 16
        %v1647 = vpack.i.b16 %v1646, %v1645
        %v1651 = vpack.i.b16 %v1524, %v1458
        %v1653 = vshrl.u32 %v1458, 16
        %v1654 = vshrl.u32 %v1524, 16
        %v1655 = vpack.i.b16 %v1654, %v1653
        %v1659 = vpack.i.b16 %v1583, %v1549
        %v1661 = vshrl.u32 %v1549, 16
        %v1662 = vshrl.u32 %v1583, 16
        %v1663 = vpack.i.b16 %v1662, %v1661
        %v1667 = vpack.i.b16 %v1591, %v1557
        %v1669 = vshrl.u32 %v1557, 16
        %v1670 = vshrl.u32 %v1591, 16
        %v1671 = vpack.i.b16 %v1670, %v1669
        %v1675 = vpack.i.b16 %v1590, %v1556
        %v1677 = vshrl.u32 %v1556, 16
        %v1678 = vshrl.u32 %v1590, 16
        %v1679 = vpack.i.b16 %v1678, %v1677
        %v1683 = vpack.i.b16 %v1592, %v1558
        %v1685 = vshrl.u32 %v1558, 16
        %v1686 = vshrl.u32 %v1592, 16
        %v1687 = vpack.i.b16 %v1686, %v1685
        %v1689 = vcombine.low %v1595, %v1611
        %v1691 = vunpack.c.l.s4 1983009808
        %v1692 = vunpack.c.0.s8 %v1691
        %v1693 = vlaneseq
        %v1694 = vshrl.u32 %v1693, 7
        %v1695 = vsub.s32 %v1692, %v1694
        %v1696 = vrot.slane %v1689, %v1695
        %v1697 = vcombine.low %v1603, %v1619
        %v1699 = vunpack.c.l.s4 1983009808
        %v1700 = vunpack.c.0.s8 %v1699
        %v1701 = vlaneseq
        %v1702 = vshrl.u32 %v1701, 7
        %v1703 = vsub.s32 %v1700, %v1702
        %v1704 = vrot.slane %v1697, %v1703
        %v1705 = vcombine.low %v1627, %v1643
        %v1707 = vunpack.c.l.s4 1983009808
        %v1708 = vunpack.c.0.s8 %v1707
        %v1709 = vlaneseq
        %v1710 = vshrl.u32 %v1709, 7
        %v1711 = vsub.s32 %v1708, %v1710
        %v1712 = vrot.slane %v1705, %v1711
        %v1713 = vcombine.low %v1635, %v1651
        %v1715 = vunpack.c.l.s4 1983009808
        %v1716 = vunpack.c.0.s8 %v1715
        %v1717 = vlaneseq
        %v1718 = vshrl.u32 %v1717, 7
        %v1719 = vsub.s32 %v1716, %v1718
        %v1720 = vrot.slane %v1713, %v1719
        %v1721 = vcombine.low %v1696, %v1704
        %v1723 = vunpack.c.l.s4 1934713408
        %v1724 = vunpack.c.0.s8 %v1723
        %v1725 = vlaneseq
        %v1726 = vshrl.u32 %v1725, 7
        %v1727 = vsub.s32 %v1724, %v1726
        %v1728 = vrot.slane %v1721, %v1727
        %v1729 = vcombine.low %v1712, %v1720
        %v1731 = vunpack.c.l.s4 1934713408
        %v1732 = vunpack.c.0.s8 %v1731
        %v1733 = vlaneseq
        %v1734 = vshrl.u32 %v1733, 7
        %v1735 = vsub.s32 %v1732, %v1734
        %v1736 = vrot.slane %v1729, %v1735
        %v1737 = vcombine.low %v1728, %v1736
        %v1738 = vcombine.high %v1728, %v1736
        %v1739 = vcombine.low %v1599, %v1615
        %v1741 = vunpack.c.l.s4 1983009808
        %v1742 = vunpack.c.0.s8 %v1741
        %v1743 = vlaneseq
        %v1744 = vshrl.u32 %v1743, 7
        %v1745 = vsub.s32 %v1742, %v1744
        %v1746 = vrot.slane %v1739, %v1745
        %v1747 = vcombine.low %v1607, %v1623
        %v1749 = vunpack.c.l.s4 1983009808
        %v1750 = vunpack.c.0.s8 %v1749
        %v1751 = vlaneseq
        %v1752 = vshrl.u32 %v1751, 7
        %v1753 = vsub.s32 %v1750, %v1752
        %v1754 = vrot.slane %v1747, %v1753
        %v1755 = vcombine.low %v1631, %v1647
        %v1757 = vunpack.c.l.s4 1983009808
        %v1758 = vunpack.c.0.s8 %v1757
        %v1759 = vlaneseq
        %v1760 = vshrl.u32 %v1759, 7
        %v1761 = vsub.s32 %v1758, %v1760
        %v1762 = vrot.slane %v1755, %v1761
        %v1763 = vcombine.low %v1639, %v1655
        %v1765 = vunpack.c.l.s4 1983009808
        %v1766 = vunpack.c.0.s8 %v1765
        %v1767 = vlaneseq
        %v1768 = vshrl.u32 %v1767, 7
        %v1769 = vsub.s32 %v1766, %v1768
        %v1770 = vrot.slane %v1763, %v1769
        %v1771 = vcombine.low %v1746, %v1754
        %v1773 = vunpack.c.l.s4 1934713408
        %v1774 = vunpack.c.0.s8 %v1773
        %v1775 = vlaneseq
        %v1776 = vshrl.u32 %v1775, 7
        %v1777 = vsub.s32 %v1774, %v1776
        %v1778 = vrot.slane %v1771, %v1777
        %v1779 = vcombine.low %v1762, %v1770
        %v1781 = vunpack.c.l.s4 1934713408
        %v1782 = vunpack.c.0.s8 %v1781
        %v1783 = vlaneseq
        %v1784 = vshrl.u32 %v1783, 7
        %v1785 = vsub.s32 %v1782, %v1784
        %v1786 = vrot.slane %v1779, %v1785
        %v1787 = vcombine.low %v1778, %v1786
        %v1788 = vcombine.high %v1778, %v1786
        %v1789 = vcombine.low %v1659, %v1675
        %v1791 = vunpack.c.l.s4 1983009808
        %v1792 = vunpack.c.0.s8 %v1791
        %v1793 = vlaneseq
        %v1794 = vshrl.u32 %v1793, 7
        %v1795 = vsub.s32 %v1792, %v1794
        %v1796 = vrot.slane %v1789, %v1795
        %v1797 = vcombine.low %v1667, %v1683
        %v1799 = vunpack.c.l.s4 1983009808
        %v1800 = vunpack.c.0.s8 %v1799
        %v1801 = vlaneseq
        %v1802 = vshrl.u32 %v1801, 7
        %v1803 = vsub.s32 %v1800, %v1802
        %v1804 = vrot.slane %v1797, %v1803
        %v1805 = vcombine.low %v1796, %v1804
        %v1807 = vunpack.c.l.s4 1934713408
        %v1808 = vunpack.c.0.s8 %v1807
        %v1809 = vlaneseq
        %v1810 = vshrl.u32 %v1809, 7
        %v1811 = vsub.s32 %v1808, %v1810
        %v1812 = vrot.slane %v1805, %v1811
        %v1813 = vcombine.high %v1812, 0
        %v1814 = vcombine.low %v1663, %v1679
        %v1816 = vunpack.c.l.s4 1983009808
        %v1817 = vunpack.c.0.s8 %v1816
        %v1818 = vlaneseq
        %v1819 = vshrl.u32 %v1818, 7
        %v1820 = vsub.s32 %v1817, %v1819
        %v1821 = vrot.slane %v1814, %v1820
        %v1822 = vcombine.low %v1671, %v1687
        %v1824 = vunpack.c.l.s4 1983009808
        %v1825 = vunpack.c.0.s8 %v1824
        %v1826 = vlaneseq
        %v1827 = vshrl.u32 %v1826, 7
        %v1828 = vsub.s32 %v1825, %v1827
        %v1829 = vrot.slane %v1822, %v1828
        %v1830 = vcombine.low %v1821, %v1829
        %v1832 = vunpack.c.l.s4 1934713408
        %v1833 = vunpack.c.0.s8 %v1832
        %v1834 = vlaneseq
        %v1835 = vshrl.u32 %v1834, 7
        %v1836 = vsub.s32 %v1833, %v1835
        %v1837 = vrot.slane %v1830, %v1836
        %v1838 = vcombine.high %v1837, 0
        %v1841 = vpack.i.b16 %v1787, %v1737
        %v1843 = vshrl.u32 %v1737, 16
        %v1844 = vshrl.u32 %v1787, 16
        %v1845 = vpack.i.b16 %v1844, %v1843
        %v1849 = vpack.i.b16 %v1788, %v1738
        %v1851 = vshrl.u32 %v1738, 16
        %v1852 = vshrl.u32 %v1788, 16
        %v1853 = vpack.i.b16 %v1852, %v1851
        %v1857 = vpack.i.b16 %v1837, %v1812
        %v1858 = vshrl.u32 %v1812, 16
        %v1859 = vshrl.u32 %v1837, 16
        %v1860 = vpack.i.b16 %v1859, %v1858
        %v1863 = vpack.i.b16 %v1838, %v1813
        %v1864 = vshrl.u32 %v1813, 16
        %v1865 = vshrl.u32 %v1838, 16
        %v1866 = vpack.i.b16 %v1865, %v1864
        %vm1867 = vcmask 64512
        %v1869 = vsel %vm1867, %v861, 0
        %v1872 = vsel %vm1867, %v1351, 0
        %1874 = vmatprep.subr.bf16.mxu0 0
        %1875 = vmatpush1.bf16.xpose.msra.mxu0 %v1872
        %1876 = vmatprep.subr.bf16.mxu0 0
        %1877 = vmatpush1.bf16.xpose.msra.mxu0 0
        %1878 = vmatprep.subr.bf16.mxu0 0
        %1879 = vmatpush1.bf16.xpose.msra.mxu0 0
        %1880 = vmatprep.subr.bf16.mxu0 0
        %1881 = vmatpush1.bf16.xpose.msra.mxu0 0
        %1882 = vmatprep.subr.bf16.mxu0 0
        %1883 = vmatpush1.bf16.xpose.msra.mxu0 0
        %1884 = vmatprep.subr.bf16.mxu0 0
        %1885 = vmatpush1.bf16.xpose.msra.mxu0 0
        %1886 = vmatprep.subr.bf16.mxu0 0
        %1887 = vmatpush1.bf16.xpose.msra.mxu0 0
        %1888 = vmatprep.subr.bf16.mxu0 0
        %1889 = vmatpush1.bf16.xpose.msra.mxu0 0
        %1890 = vmatprep.subr.bf16.mxu0 0
        %1891 = vmatpush1.bf16.xpose.msra.mxu0 0
        %1892 = vmatprep.subr.bf16.mxu0 0
        %1893 = vmatpush1.bf16.xpose.msra.mxu0 0
        %1894 = vmatprep.subr.bf16.mxu0 0
        %1895 = vmatpush1.bf16.xpose.msra.mxu0 0
        %1896 = vmatprep.subr.bf16.mxu0 0
        %1897 = vmatpush1.bf16.xpose.msra.mxu0 0
        %1898 = vmatprep.subr.bf16.mxu0 0
        %1899 = vmatpush1.bf16.xpose.msra.mxu0 0
        %1900 = vmatprep.subr.bf16.mxu0 0
        %1901 = vmatpush1.bf16.xpose.msra.mxu0 0
        %1902 = vmatprep.subr.bf16.mxu0 0
        %1903 = vmatpush1.bf16.xpose.msra.mxu0 0
        %1904 = vmatprep.subr.bf16.mxu0 0
        %1905 = vmatpush1.bf16.xpose.msra.mxu0 0
        %1906 = vmatprep.mubr.bf16.mxu0 0
        %1907 = vmatmul.mubr.bf16.gmra.mrb[0].mxu0 %v1869
        %v1908 = vpop.f32.mrb[0].mxu0
        %v1909 = vadd.f32 0.0, %v1908
        %v1910 = vpop.f32.mrb[0].mxu0
        %v1911 = vpop.f32.mrb[0].mxu0
        %v1912 = vpop.f32.mrb[0].mxu0
        %1913 = vdwg.mxu0
        %v1915 = vsel %vm1867, %v864, 0
        %v1918 = vsel %vm1867, %v1354, 0
        %1920 = vmatprep.subr.bf16.mxu0 0
        %1921 = vmatpush1.bf16.xpose.msra.mxu0 %v1918
        %1922 = vmatprep.subr.bf16.mxu0 0
        %1923 = vmatpush1.bf16.xpose.msra.mxu0 0
        %1924 = vmatprep.subr.bf16.mxu0 0
        %1925 = vmatpush1.bf16.xpose.msra.mxu0 0
        %1926 = vmatprep.subr.bf16.mxu0 0
        %1927 = vmatpush1.bf16.xpose.msra.mxu0 0
        %1928 = vmatprep.subr.bf16.mxu0 0
        %1929 = vmatpush1.bf16.xpose.msra.mxu0 0
        %1930 = vmatprep.subr.bf16.mxu0 0
        %1931 = vmatpush1.bf16.xpose.msra.mxu0 0
        %1932 = vmatprep.subr.bf16.mxu0 0
        %1933 = vmatpush1.bf16.xpose.msra.mxu0 0
        %1934 = vmatprep.subr.bf16.mxu0 0
        %1935 = vmatpush1.bf16.xpose.msra.mxu0 0
        %1936 = vmatprep.subr.bf16.mxu0 0
        %1937 = vmatpush1.bf16.xpose.msra.mxu0 0
        %1938 = vmatprep.subr.bf16.mxu0 0
        %1939 = vmatpush1.bf16.xpose.msra.mxu0 0
        %1940 = vmatprep.subr.bf16.mxu0 0
        %1941 = vmatpush1.bf16.xpose.msra.mxu0 0
        %1942 = vmatprep.subr.bf16.mxu0 0
        %1943 = vmatpush1.bf16.xpose.msra.mxu0 0
        %1944 = vmatprep.subr.bf16.mxu0 0
        %1945 = vmatpush1.bf16.xpose.msra.mxu0 0
        %1946 = vmatprep.subr.bf16.mxu0 0
        %1947 = vmatpush1.bf16.xpose.msra.mxu0 0
        %1948 = vmatprep.subr.bf16.mxu0 0
        %1949 = vmatpush1.bf16.xpose.msra.mxu0 0
        %1950 = vmatprep.subr.bf16.mxu0 0
        %1951 = vmatpush1.bf16.xpose.msra.mxu0 0
        %1952 = vmatprep.mubr.bf16.mxu0 0
        %1953 = vmatmul.mubr.bf16.gmra.mrb[0].mxu0 %v1915
        %v1954 = vpop.f32.mrb[0].mxu0
        %v1955 = vadd.f32 0.0, %v1954
        %v1956 = vpop.f32.mrb[0].mxu0
        %v1957 = vpop.f32.mrb[0].mxu0
        %v1958 = vpop.f32.mrb[0].mxu0
        %1959 = vdwg.mxu0
        %v1961 = vsel %vm1867, %v867, 0
        %v1964 = vsel %vm1867, %v1357, 0
        %1966 = vmatprep.subr.bf16.mxu0 0
        %1967 = vmatpush1.bf16.xpose.msra.mxu0 %v1964
        %1968 = vmatprep.subr.bf16.mxu0 0
        %1969 = vmatpush1.bf16.xpose.msra.mxu0 0
        %1970 = vmatprep.subr.bf16.mxu0 0
        %1971 = vmatpush1.bf16.xpose.msra.mxu0 0
        %1972 = vmatprep.subr.bf16.mxu0 0
        %1973 = vmatpush1.bf16.xpose.msra.mxu0 0
        %1974 = vmatprep.subr.bf16.mxu0 0
        %1975 = vmatpush1.bf16.xpose.msra.mxu0 0
        %1976 = vmatprep.subr.bf16.mxu0 0
        %1977 = vmatpush1.bf16.xpose.msra.mxu0 0
        %1978 = vmatprep.subr.bf16.mxu0 0
        %1979 = vmatpush1.bf16.xpose.msra.mxu0 0
        %1980 = vmatprep.subr.bf16.mxu0 0
        %1981 = vmatpush1.bf16.xpose.msra.mxu0 0
        %1982 = vmatprep.subr.bf16.mxu0 0
        %1983 = vmatpush1.bf16.xpose.msra.mxu0 0
        %1984 = vmatprep.subr.bf16.mxu0 0
        %1985 = vmatpush1.bf16.xpose.msra.mxu0 0
        %1986 = vmatprep.subr.bf16.mxu0 0
        %1987 = vmatpush1.bf16.xpose.msra.mxu0 0
        %1988 = vmatprep.subr.bf16.mxu0 0
        %1989 = vmatpush1.bf16.xpose.msra.mxu0 0
        %1990 = vmatprep.subr.bf16.mxu0 0
        %1991 = vmatpush1.bf16.xpose.msra.mxu0 0
        %1992 = vmatprep.subr.bf16.mxu0 0
        %1993 = vmatpush1.bf16.xpose.msra.mxu0 0
        %1994 = vmatprep.subr.bf16.mxu0 0
        %1995 = vmatpush1.bf16.xpose.msra.mxu0 0
        %1996 = vmatprep.subr.bf16.mxu0 0
        %1997 = vmatpush1.bf16.xpose.msra.mxu0 0
        %1998 = vmatprep.mubr.bf16.mxu0 0
        %1999 = vmatmul.mubr.bf16.gmra.mrb[0].mxu0 %v1961
        %v2000 = vpop.f32.mrb[0].mxu0
        %v2001 = vadd.f32 0.0, %v2000
        %v2002 = vpop.f32.mrb[0].mxu0
        %v2003 = vpop.f32.mrb[0].mxu0
        %v2004 = vpop.f32.mrb[0].mxu0
        %2005 = vdwg.mxu0
        %v2007 = vsel %vm1867, %v870, 0
        %v2010 = vsel %vm1867, %v1360, 0
        %2012 = vmatprep.subr.bf16.mxu0 0
        %2013 = vmatpush1.bf16.xpose.msra.mxu0 %v2010
        %2014 = vmatprep.subr.bf16.mxu0 0
        %2015 = vmatpush1.bf16.xpose.msra.mxu0 0
        %2016 = vmatprep.subr.bf16.mxu0 0
        %2017 = vmatpush1.bf16.xpose.msra.mxu0 0
        %2018 = vmatprep.subr.bf16.mxu0 0
        %2019 = vmatpush1.bf16.xpose.msra.mxu0 0
        %2020 = vmatprep.subr.bf16.mxu0 0
        %2021 = vmatpush1.bf16.xpose.msra.mxu0 0
        %2022 = vmatprep.subr.bf16.mxu0 0
        %2023 = vmatpush1.bf16.xpose.msra.mxu0 0
        %2024 = vmatprep.subr.bf16.mxu0 0
        %2025 = vmatpush1.bf16.xpose.msra.mxu0 0
        %2026 = vmatprep.subr.bf16.mxu0 0
        %2027 = vmatpush1.bf16.xpose.msra.mxu0 0
        %2028 = vmatprep.subr.bf16.mxu0 0
        %2029 = vmatpush1.bf16.xpose.msra.mxu0 0
        %2030 = vmatprep.subr.bf16.mxu0 0
        %2031 = vmatpush1.bf16.xpose.msra.mxu0 0
        %2032 = vmatprep.subr.bf16.mxu0 0
        %2033 = vmatpush1.bf16.xpose.msra.mxu0 0
        %2034 = vmatprep.subr.bf16.mxu0 0
        %2035 = vmatpush1.bf16.xpose.msra.mxu0 0
        %2036 = vmatprep.subr.bf16.mxu0 0
        %2037 = vmatpush1.bf16.xpose.msra.mxu0 0
        %2038 = vmatprep.subr.bf16.mxu0 0
        %2039 = vmatpush1.bf16.xpose.msra.mxu0 0
        %2040 = vmatprep.subr.bf16.mxu0 0
        %2041 = vmatpush1.bf16.xpose.msra.mxu0 0
        %2042 = vmatprep.subr.bf16.mxu0 0
        %2043 = vmatpush1.bf16.xpose.msra.mxu0 0
        %2044 = vmatprep.mubr.bf16.mxu0 0
        %2045 = vmatmul.mubr.bf16.gmra.mrb[0].mxu0 %v2007
        %v2046 = vpop.f32.mrb[0].mxu0
        %v2047 = vadd.f32 0.0, %v2046
        %v2048 = vpop.f32.mrb[0].mxu0
        %v2049 = vpop.f32.mrb[0].mxu0
        %v2050 = vpop.f32.mrb[0].mxu0
        %2051 = vdwg.mxu0
        %v2052 = vsel %vm1867, %v1909, -inf
        %2053 = vmax.xlane.f32.xlu0 %v2052
        %v2054 = vpop.xlane.xlu0 %2053
        %v2055 = vsel %vm1867, %v1955, -inf
        %2056 = vmax.xlane.f32.xlu0 %v2055
        %v2057 = vpop.xlane.xlu0 %2056
        %v2058 = vsel %vm1867, %v2001, -inf
        %2059 = vmax.xlane.f32.xlu0 %v2058
        %v2060 = vpop.xlane.xlu0 %2059
        %v2061 = vsel %vm1867, %v2047, -inf
        %2062 = vmax.xlane.f32.xlu0 %v2061
        %v2063 = vpop.xlane.xlu0 %2062
        %v2064 = vsub.f32 %v1909, %v2054
        %v2065 = vsub.f32 %v1955, %v2057
        %v2066 = vsub.f32 %v2001, %v2060
        %v2067 = vsub.f32 %v2047, %v2063
        %v2068 = vmul.f32 %v2064, 1.442695
        %v2069 = vpow.pop %v2068
        %v2070 = vmul.f32 %v2065, 1.442695
        %v2071 = vpow.pop %v2070
        %v2072 = vmul.f32 %v2066, 1.442695
        %v2073 = vpow.pop %v2072
        %v2074 = vmul.f32 %v2067, 1.442695
        %v2075 = vpow.pop %v2074
        %v2076 = vsel %vm1867, %v2069, 0.0
        %2077 = vadd.xlane.f32.xlu0 %v2076
        %v2078 = vpop.xlane.xlu0 %2077
        %v2079 = vsel %vm1867, %v2071, 0.0
        %2080 = vadd.xlane.f32.xlu0 %v2079
        %v2081 = vpop.xlane.xlu0 %2080
        %v2082 = vsel %vm1867, %v2073, 0.0
        %2083 = vadd.xlane.f32.xlu0 %v2082
        %v2084 = vpop.xlane.xlu0 %2083
        %v2085 = vsel %vm1867, %v2075, 0.0
        %2086 = vadd.xlane.f32.xlu0 %v2085
        %v2087 = vpop.xlane.xlu0 %2086
        %v2088 = vrcp.pop %v2078
        %v2089 = vrcp.pop %v2081
        %v2090 = vrcp.pop %v2084
        %v2091 = vrcp.pop %v2087
        %v2092 = vmul.f32 %v2069, %v2088
        %v2093 = vmul.f32 %v2071, %v2089
        %v2094 = vmul.f32 %v2073, %v2090
        %v2095 = vmul.f32 %v2075, %v2091
        %v2096 = vpack.c.bf16 %v2092, %v2092
        %v2097 = vpack.c.bf16 %v2093, %v2093
        %v2098 = vpack.c.bf16 %v2094, %v2094
        %v2099 = vpack.c.bf16 %v2095, %v2095
        %v2101 = vsel %vm1867, %v2096, 0
        %vm2103 = vcmask 1043456
        %v2105 = vsel %vm2103, %v1841, 0
        %2107 = vmatprep.subr.bf16.mxu0 0
        %2108 = vmatpush1.bf16.msra.mxu0 %v2105
        %2109 = vmatprep.subr.bf16.mxu0 0
        %2110 = vmatpush1.bf16.msra.mxu0 0
        %2111 = vmatprep.subr.bf16.mxu0 0
        %2112 = vmatpush1.bf16.msra.mxu0 0
        %2113 = vmatprep.subr.bf16.mxu0 0
        %2114 = vmatpush1.bf16.msra.mxu0 0
        %2115 = vmatprep.subr.bf16.mxu0 0
        %2116 = vmatpush1.bf16.msra.mxu0 0
        %2117 = vmatprep.subr.bf16.mxu0 0
        %2118 = vmatpush1.bf16.msra.mxu0 0
        %2119 = vmatprep.subr.bf16.mxu0 0
        %2120 = vmatpush1.bf16.msra.mxu0 0
        %2121 = vmatprep.subr.bf16.mxu0 0
        %2122 = vmatpush1.bf16.msra.mxu0 0
        %2123 = vmatprep.subr.bf16.mxu0 0
        %2124 = vmatpush1.bf16.msra.mxu0 0
        %2125 = vmatprep.subr.bf16.mxu0 0
        %2126 = vmatpush1.bf16.msra.mxu0 0
        %2127 = vmatprep.subr.bf16.mxu0 0
        %2128 = vmatpush1.bf16.msra.mxu0 0
        %2129 = vmatprep.subr.bf16.mxu0 0
        %2130 = vmatpush1.bf16.msra.mxu0 0
        %2131 = vmatprep.subr.bf16.mxu0 0
        %2132 = vmatpush1.bf16.msra.mxu0 0
        %2133 = vmatprep.subr.bf16.mxu0 0
        %2134 = vmatpush1.bf16.msra.mxu0 0
        %2135 = vmatprep.subr.bf16.mxu0 0
        %2136 = vmatpush1.bf16.msra.mxu0 0
        %2137 = vmatprep.subr.bf16.mxu0 0
        %2138 = vmatpush1.bf16.msra.mxu0 0
        %2139 = vmatprep.mubr.bf16.mxu0 0
        %2140 = vmatmul.mubr.bf16.gmra.mrb[0].mxu0 %v2101
        %v2141 = vpop.f32.mrb[0].mxu0
        %v2142 = vadd.f32 0.0, %v2141
        %v2143 = vpop.f32.mrb[0].mxu0
        %v2144 = vpop.f32.mrb[0].mxu0
        %v2145 = vpop.f32.mrb[0].mxu0
        %2146 = vdwg.mxu0
        %v2148 = vsel %vm1867, %v2097, 0
        %v2151 = vsel %vm2103, %v1845, 0
        %2153 = vmatprep.subr.bf16.mxu0 0
        %2154 = vmatpush1.bf16.msra.mxu0 %v2151
        %2155 = vmatprep.subr.bf16.mxu0 0
        %2156 = vmatpush1.bf16.msra.mxu0 0
        %2157 = vmatprep.subr.bf16.mxu0 0
        %2158 = vmatpush1.bf16.msra.mxu0 0
        %2159 = vmatprep.subr.bf16.mxu0 0
        %2160 = vmatpush1.bf16.msra.mxu0 0
        %2161 = vmatprep.subr.bf16.mxu0 0
        %2162 = vmatpush1.bf16.msra.mxu0 0
        %2163 = vmatprep.subr.bf16.mxu0 0
        %2164 = vmatpush1.bf16.msra.mxu0 0
        %2165 = vmatprep.subr.bf16.mxu0 0
        %2166 = vmatpush1.bf16.msra.mxu0 0
        %2167 = vmatprep.subr.bf16.mxu0 0
        %2168 = vmatpush1.bf16.msra.mxu0 0
        %2169 = vmatprep.subr.bf16.mxu0 0
        %2170 = vmatpush1.bf16.msra.mxu0 0
        %2171 = vmatprep.subr.bf16.mxu0 0
        %2172 = vmatpush1.bf16.msra.mxu0 0
        %2173 = vmatprep.subr.bf16.mxu0 0
        %2174 = vmatpush1.bf16.msra.mxu0 0
        %2175 = vmatprep.subr.bf16.mxu0 0
        %2176 = vmatpush1.bf16.msra.mxu0 0
        %2177 = vmatprep.subr.bf16.mxu0 0
        %2178 = vmatpush1.bf16.msra.mxu0 0
        %2179 = vmatprep.subr.bf16.mxu0 0
        %2180 = vmatpush1.bf16.msra.mxu0 0
        %2181 = vmatprep.subr.bf16.mxu0 0
        %2182 = vmatpush1.bf16.msra.mxu0 0
        %2183 = vmatprep.subr.bf16.mxu0 0
        %2184 = vmatpush1.bf16.msra.mxu0 0
        %2185 = vmatprep.mubr.bf16.mxu0 0
        %2186 = vmatmul.mubr.bf16.gmra.mrb[0].mxu0 %v2148
        %v2187 = vpop.f32.mrb[0].mxu0
        %v2188 = vadd.f32 0.0, %v2187
        %v2189 = vpop.f32.mrb[0].mxu0
        %v2190 = vpop.f32.mrb[0].mxu0
        %v2191 = vpop.f32.mrb[0].mxu0
        %2192 = vdwg.mxu0
        %v2194 = vsel %vm1867, %v2098, 0
        %v2197 = vsel %vm2103, %v1849, 0
        %2199 = vmatprep.subr.bf16.mxu0 0
        %2200 = vmatpush1.bf16.msra.mxu0 %v2197
        %2201 = vmatprep.subr.bf16.mxu0 0
        %2202 = vmatpush1.bf16.msra.mxu0 0
        %2203 = vmatprep.subr.bf16.mxu0 0
        %2204 = vmatpush1.bf16.msra.mxu0 0
        %2205 = vmatprep.subr.bf16.mxu0 0
        %2206 = vmatpush1.bf16.msra.mxu0 0
        %2207 = vmatprep.subr.bf16.mxu0 0
        %2208 = vmatpush1.bf16.msra.mxu0 0
        %2209 = vmatprep.subr.bf16.mxu0 0
        %2210 = vmatpush1.bf16.msra.mxu0 0
        %2211 = vmatprep.subr.bf16.mxu0 0
        %2212 = vmatpush1.bf16.msra.mxu0 0
        %2213 = vmatprep.subr.bf16.mxu0 0
        %2214 = vmatpush1.bf16.msra.mxu0 0
        %2215 = vmatprep.subr.bf16.mxu0 0
        %2216 = vmatpush1.bf16.msra.mxu0 0
        %2217 = vmatprep.subr.bf16.mxu0 0
        %2218 = vmatpush1.bf16.msra.mxu0 0
        %2219 = vmatprep.subr.bf16.mxu0 0
        %2220 = vmatpush1.bf16.msra.mxu0 0
        %2221 = vmatprep.subr.bf16.mxu0 0
        %2222 = vmatpush1.bf16.msra.mxu0 0
        %2223 = vmatprep.subr.bf16.mxu0 0
        %2224 = vmatpush1.bf16.msra.mxu0 0
        %2225 = vmatprep.subr.bf16.mxu0 0
        %2226 = vmatpush1.bf16.msra.mxu0 0
        %2227 = vmatprep.subr.bf16.mxu0 0
        %2228 = vmatpush1.bf16.msra.mxu0 0
        %2229 = vmatprep.subr.bf16.mxu0 0
        %2230 = vmatpush1.bf16.msra.mxu0 0
        %2231 = vmatprep.mubr.bf16.mxu0 0
        %2232 = vmatmul.mubr.bf16.gmra.mrb[0].mxu0 %v2194
        %v2233 = vpop.f32.mrb[0].mxu0
        %v2234 = vadd.f32 0.0, %v2233
        %v2235 = vpop.f32.mrb[0].mxu0
        %v2236 = vpop.f32.mrb[0].mxu0
        %v2237 = vpop.f32.mrb[0].mxu0
        %2238 = vdwg.mxu0
        %v2240 = vsel %vm1867, %v2099, 0
        %v2243 = vsel %vm2103, %v1853, 0
        %2245 = vmatprep.subr.bf16.mxu0 0
        %2246 = vmatpush1.bf16.msra.mxu0 %v2243
        %2247 = vmatprep.subr.bf16.mxu0 0
        %2248 = vmatpush1.bf16.msra.mxu0 0
        %2249 = vmatprep.subr.bf16.mxu0 0
        %2250 = vmatpush1.bf16.msra.mxu0 0
        %2251 = vmatprep.subr.bf16.mxu0 0
        %2252 = vmatpush1.bf16.msra.mxu0 0
        %2253 = vmatprep.subr.bf16.mxu0 0
        %2254 = vmatpush1.bf16.msra.mxu0 0
        %2255 = vmatprep.subr.bf16.mxu0 0
        %2256 = vmatpush1.bf16.msra.mxu0 0
        %2257 = vmatprep.subr.bf16.mxu0 0
        %2258 = vmatpush1.bf16.msra.mxu0 0
        %2259 = vmatprep.subr.bf16.mxu0 0
        %2260 = vmatpush1.bf16.msra.mxu0 0
        %2261 = vmatprep.subr.bf16.mxu0 0
        %2262 = vmatpush1.bf16.msra.mxu0 0
        %2263 = vmatprep.subr.bf16.mxu0 0
        %2264 = vmatpush1.bf16.msra.mxu0 0
        %2265 = vmatprep.subr.bf16.mxu0 0
        %2266 = vmatpush1.bf16.msra.mxu0 0
        %2267 = vmatprep.subr.bf16.mxu0 0
        %2268 = vmatpush1.bf16.msra.mxu0 0
        %2269 = vmatprep.subr.bf16.mxu0 0
        %2270 = vmatpush1.bf16.msra.mxu0 0
        %2271 = vmatprep.subr.bf16.mxu0 0
        %2272 = vmatpush1.bf16.msra.mxu0 0
        %2273 = vmatprep.subr.bf16.mxu0 0
        %2274 = vmatpush1.bf16.msra.mxu0 0
        %2275 = vmatprep.subr.bf16.mxu0 0
        %2276 = vmatpush1.bf16.msra.mxu0 0
        %2277 = vmatprep.mubr.bf16.mxu0 0
        %2278 = vmatmul.mubr.bf16.gmra.mrb[0].mxu0 %v2240
        %v2279 = vpop.f32.mrb[0].mxu0
        %v2280 = vadd.f32 0.0, %v2279
        %v2281 = vpop.f32.mrb[0].mxu0
        %v2282 = vpop.f32.mrb[0].mxu0
        %v2283 = vpop.f32.mrb[0].mxu0
        %2284 = vdwg.mxu0
        %vm2285 = vcmask 1043456
        %v2286 = vrot.slane %v861, 4
        %v2287 = vrot.slane %v873, 4
        %v2288 = vsel %vm2285, %v2286, %v2287
        %v2290 = vsel %vm1867, %v2288, 0
        %v2293 = vsel %vm1867, %v1363, 0
        %2295 = vmatprep.subr.bf16.mxu0 0
        %2296 = vmatpush1.bf16.xpose.msra.mxu0 %v1872
        %2297 = vmatprep.subr.bf16.mxu0 0
        %2298 = vmatpush1.bf16.xpose.msra.mxu0 %v2293
        %2299 = vmatprep.subr.bf16.mxu0 0
        %2300 = vmatpush1.bf16.xpose.msra.mxu0 0
        %2301 = vmatprep.subr.bf16.mxu0 0
        %2302 = vmatpush1.bf16.xpose.msra.mxu0 0
        %2303 = vmatprep.subr.bf16.mxu0 0
        %2304 = vmatpush1.bf16.xpose.msra.mxu0 0
        %2305 = vmatprep.subr.bf16.mxu0 0
        %2306 = vmatpush1.bf16.xpose.msra.mxu0 0
        %2307 = vmatprep.subr.bf16.mxu0 0
        %2308 = vmatpush1.bf16.xpose.msra.mxu0 0
        %2309 = vmatprep.subr.bf16.mxu0 0
        %2310 = vmatpush1.bf16.xpose.msra.mxu0 0
        %2311 = vmatprep.subr.bf16.mxu0 0
        %2312 = vmatpush1.bf16.xpose.msra.mxu0 0
        %2313 = vmatprep.subr.bf16.mxu0 0
        %2314 = vmatpush1.bf16.xpose.msra.mxu0 0
        %2315 = vmatprep.subr.bf16.mxu0 0
        %2316 = vmatpush1.bf16.xpose.msra.mxu0 0
        %2317 = vmatprep.subr.bf16.mxu0 0
        %2318 = vmatpush1.bf16.xpose.msra.mxu0 0
        %2319 = vmatprep.subr.bf16.mxu0 0
        %2320 = vmatpush1.bf16.xpose.msra.mxu0 0
        %2321 = vmatprep.subr.bf16.mxu0 0
        %2322 = vmatpush1.bf16.xpose.msra.mxu0 0
        %2323 = vmatprep.subr.bf16.mxu0 0
        %2324 = vmatpush1.bf16.xpose.msra.mxu0 0
        %2325 = vmatprep.subr.bf16.mxu0 0
        %2326 = vmatpush1.bf16.xpose.msra.mxu0 0
        %2327 = vmatprep.mubr.bf16.mxu0 0
        %2328 = vmatmul.mubr.bf16.gmra.mrb[0].mxu0 %v2290
        %v2329 = vpop.f32.mrb[0].mxu0
        %v2330 = vadd.f32 0.0, %v2329
        %v2331 = vpop.f32.mrb[0].mxu0
        %v2332 = vpop.f32.mrb[0].mxu0
        %v2333 = vadd.f32 0.0, %v2332
        %v2334 = vpop.f32.mrb[0].mxu0
        %2335 = vdwg.mxu0
        %v2336 = vrot.slane %v864, 4
        %v2337 = vrot.slane %v876, 4
        %v2338 = vsel %vm2285, %v2336, %v2337
        %v2340 = vsel %vm1867, %v2338, 0
        %v2343 = vsel %vm1867, %v1366, 0
        %2345 = vmatprep.subr.bf16.mxu0 0
        %2346 = vmatpush1.bf16.xpose.msra.mxu0 %v1918
        %2347 = vmatprep.subr.bf16.mxu0 0
        %2348 = vmatpush1.bf16.xpose.msra.mxu0 %v2343
        %2349 = vmatprep.subr.bf16.mxu0 0
        %2350 = vmatpush1.bf16.xpose.msra.mxu0 0
        %2351 = vmatprep.subr.bf16.mxu0 0
        %2352 = vmatpush1.bf16.xpose.msra.mxu0 0
        %2353 = vmatprep.subr.bf16.mxu0 0
        %2354 = vmatpush1.bf16.xpose.msra.mxu0 0
        %2355 = vmatprep.subr.bf16.mxu0 0
        %2356 = vmatpush1.bf16.xpose.msra.mxu0 0
        %2357 = vmatprep.subr.bf16.mxu0 0
        %2358 = vmatpush1.bf16.xpose.msra.mxu0 0
        %2359 = vmatprep.subr.bf16.mxu0 0
        %2360 = vmatpush1.bf16.xpose.msra.mxu0 0
        %2361 = vmatprep.subr.bf16.mxu0 0
        %2362 = vmatpush1.bf16.xpose.msra.mxu0 0
        %2363 = vmatprep.subr.bf16.mxu0 0
        %2364 = vmatpush1.bf16.xpose.msra.mxu0 0
        %2365 = vmatprep.subr.bf16.mxu0 0
        %2366 = vmatpush1.bf16.xpose.msra.mxu0 0
        %2367 = vmatprep.subr.bf16.mxu0 0
        %2368 = vmatpush1.bf16.xpose.msra.mxu0 0
        %2369 = vmatprep.subr.bf16.mxu0 0
        %2370 = vmatpush1.bf16.xpose.msra.mxu0 0
        %2371 = vmatprep.subr.bf16.mxu0 0
        %2372 = vmatpush1.bf16.xpose.msra.mxu0 0
        %2373 = vmatprep.subr.bf16.mxu0 0
        %2374 = vmatpush1.bf16.xpose.msra.mxu0 0
        %2375 = vmatprep.subr.bf16.mxu0 0
        %2376 = vmatpush1.bf16.xpose.msra.mxu0 0
        %2377 = vmatprep.mubr.bf16.mxu0 0
        %2378 = vmatmul.mubr.bf16.gmra.mrb[0].mxu0 %v2340
        %v2379 = vpop.f32.mrb[0].mxu0
        %v2380 = vadd.f32 0.0, %v2379
        %v2381 = vpop.f32.mrb[0].mxu0
        %v2382 = vpop.f32.mrb[0].mxu0
        %v2383 = vadd.f32 0.0, %v2382
        %v2384 = vpop.f32.mrb[0].mxu0
        %2385 = vdwg.mxu0
        %v2386 = vrot.slane %v867, 4
        %v2387 = vrot.slane %v879, 4
        %v2388 = vsel %vm2285, %v2386, %v2387
        %v2390 = vsel %vm1867, %v2388, 0
        %v2393 = vsel %vm1867, %v1369, 0
        %2395 = vmatprep.subr.bf16.mxu0 0
        %2396 = vmatpush1.bf16.xpose.msra.mxu0 %v1964
        %2397 = vmatprep.subr.bf16.mxu0 0
        %2398 = vmatpush1.bf16.xpose.msra.mxu0 %v2393
        %2399 = vmatprep.subr.bf16.mxu0 0
        %2400 = vmatpush1.bf16.xpose.msra.mxu0 0
        %2401 = vmatprep.subr.bf16.mxu0 0
        %2402 = vmatpush1.bf16.xpose.msra.mxu0 0
        %2403 = vmatprep.subr.bf16.mxu0 0
        %2404 = vmatpush1.bf16.xpose.msra.mxu0 0
        %2405 = vmatprep.subr.bf16.mxu0 0
        %2406 = vmatpush1.bf16.xpose.msra.mxu0 0
        %2407 = vmatprep.subr.bf16.mxu0 0
        %2408 = vmatpush1.bf16.xpose.msra.mxu0 0
        %2409 = vmatprep.subr.bf16.mxu0 0
        %2410 = vmatpush1.bf16.xpose.msra.mxu0 0
        %2411 = vmatprep.subr.bf16.mxu0 0
        %2412 = vmatpush1.bf16.xpose.msra.mxu0 0
        %2413 = vmatprep.subr.bf16.mxu0 0
        %2414 = vmatpush1.bf16.xpose.msra.mxu0 0
        %2415 = vmatprep.subr.bf16.mxu0 0
        %2416 = vmatpush1.bf16.xpose.msra.mxu0 0
        %2417 = vmatprep.subr.bf16.mxu0 0
        %2418 = vmatpush1.bf16.xpose.msra.mxu0 0
        %2419 = vmatprep.subr.bf16.mxu0 0
        %2420 = vmatpush1.bf16.xpose.msra.mxu0 0
        %2421 = vmatprep.subr.bf16.mxu0 0
        %2422 = vmatpush1.bf16.xpose.msra.mxu0 0
        %2423 = vmatprep.subr.bf16.mxu0 0
        %2424 = vmatpush1.bf16.xpose.msra.mxu0 0
        %2425 = vmatprep.subr.bf16.mxu0 0
        %2426 = vmatpush1.bf16.xpose.msra.mxu0 0
        %2427 = vmatprep.mubr.bf16.mxu0 0
        %2428 = vmatmul.mubr.bf16.gmra.mrb[0].mxu0 %v2390
        %v2429 = vpop.f32.mrb[0].mxu0
        %v2430 = vadd.f32 0.0, %v2429
        %v2431 = vpop.f32.mrb[0].mxu0
        %v2432 = vpop.f32.mrb[0].mxu0
        %v2433 = vadd.f32 0.0, %v2432
        %v2434 = vpop.f32.mrb[0].mxu0
        %2435 = vdwg.mxu0
        %v2436 = vrot.slane %v870, 4
        %v2437 = vrot.slane %v882, 4
        %v2438 = vsel %vm2285, %v2436, %v2437
        %v2440 = vsel %vm1867, %v2438, 0
        %v2443 = vsel %vm1867, %v1372, 0
        %2445 = vmatprep.subr.bf16.mxu0 0
        %2446 = vmatpush1.bf16.xpose.msra.mxu0 %v2010
        %2447 = vmatprep.subr.bf16.mxu0 0
        %2448 = vmatpush1.bf16.xpose.msra.mxu0 %v2443
        %2449 = vmatprep.subr.bf16.mxu0 0
        %2450 = vmatpush1.bf16.xpose.msra.mxu0 0
        %2451 = vmatprep.subr.bf16.mxu0 0
        %2452 = vmatpush1.bf16.xpose.msra.mxu0 0
        %2453 = vmatprep.subr.bf16.mxu0 0
        %2454 = vmatpush1.bf16.xpose.msra.mxu0 0
        %2455 = vmatprep.subr.bf16.mxu0 0
        %2456 = vmatpush1.bf16.xpose.msra.mxu0 0
        %2457 = vmatprep.subr.bf16.mxu0 0
        %2458 = vmatpush1.bf16.xpose.msra.mxu0 0
        %2459 = vmatprep.subr.bf16.mxu0 0
        %2460 = vmatpush1.bf16.xpose.msra.mxu0 0
        %2461 = vmatprep.subr.bf16.mxu0 0
        %2462 = vmatpush1.bf16.xpose.msra.mxu0 0
        %2463 = vmatprep.subr.bf16.mxu0 0
        %2464 = vmatpush1.bf16.xpose.msra.mxu0 0
        %2465 = vmatprep.subr.bf16.mxu0 0
        %2466 = vmatpush1.bf16.xpose.msra.mxu0 0
        %2467 = vmatprep.subr.bf16.mxu0 0
        %2468 = vmatpush1.bf16.xpose.msra.mxu0 0
        %2469 = vmatprep.subr.bf16.mxu0 0
        %2470 = vmatpush1.bf16.xpose.msra.mxu0 0
        %2471 = vmatprep.subr.bf16.mxu0 0
        %2472 = vmatpush1.bf16.xpose.msra.mxu0 0
        %2473 = vmatprep.subr.bf16.mxu0 0
        %2474 = vmatpush1.bf16.xpose.msra.mxu0 0
        %2475 = vmatprep.subr.bf16.mxu0 0
        %2476 = vmatpush1.bf16.xpose.msra.mxu0 0
        %2477 = vmatprep.mubr.bf16.mxu0 0
        %2478 = vmatmul.mubr.bf16.gmra.mrb[0].mxu0 %v2440
        %v2479 = vpop.f32.mrb[0].mxu0
        %v2480 = vadd.f32 0.0, %v2479
        %v2481 = vpop.f32.mrb[0].mxu0
        %v2482 = vpop.f32.mrb[0].mxu0
        %v2483 = vadd.f32 0.0, %v2482
        %v2484 = vpop.f32.mrb[0].mxu0
        %2485 = vdwg.mxu0
        %vm2486 = vcmask 195584
        %v2487 = vsel %vm2486, %v2330, -inf
        %2488 = vmax.xlane.f32.xlu0 %v2487
        %v2489 = vpop.xlane.xlu0 %2488
        %v2490 = vsel %vm2486, %v2333, -inf
        %2491 = vmax.xlane.f32.xlu0 %v2490
        %v2492 = vpop.xlane.xlu0 %2491
        %v2493 = vsel %vm2486, %v2380, -inf
        %2494 = vmax.xlane.f32.xlu0 %v2493
        %v2495 = vpop.xlane.xlu0 %2494
        %v2496 = vsel %vm2486, %v2383, -inf
        %2497 = vmax.xlane.f32.xlu0 %v2496
        %v2498 = vpop.xlane.xlu0 %2497
        %v2499 = vsel %vm2486, %v2430, -inf
        %2500 = vmax.xlane.f32.xlu0 %v2499
        %v2501 = vpop.xlane.xlu0 %2500
        %v2502 = vsel %vm2486, %v2433, -inf
        %2503 = vmax.xlane.f32.xlu0 %v2502
        %v2504 = vpop.xlane.xlu0 %2503
        %v2505 = vsel %vm2486, %v2480, -inf
        %2506 = vmax.xlane.f32.xlu0 %v2505
        %v2507 = vpop.xlane.xlu0 %2506
        %v2508 = vsel %vm2486, %v2483, -inf
        %2509 = vmax.xlane.f32.xlu0 %v2508
        %v2510 = vpop.xlane.xlu0 %2509
        %v2511 = vsub.f32 %v2330, %v2489
        %v2512 = vsub.f32 %v2333, %v2492
        %v2513 = vsub.f32 %v2380, %v2495
        %v2514 = vsub.f32 %v2383, %v2498
        %v2515 = vsub.f32 %v2430, %v2501
        %v2516 = vsub.f32 %v2433, %v2504
        %v2517 = vsub.f32 %v2480, %v2507
        %v2518 = vsub.f32 %v2483, %v2510
        %v2519 = vmul.f32 %v2511, 1.442695
        %v2520 = vpow.pop %v2519
        %v2521 = vmul.f32 %v2512, 1.442695
        %v2522 = vpow.pop %v2521
        %v2523 = vmul.f32 %v2513, 1.442695
        %v2524 = vpow.pop %v2523
        %v2525 = vmul.f32 %v2514, 1.442695
        %v2526 = vpow.pop %v2525
        %v2527 = vmul.f32 %v2515, 1.442695
        %v2528 = vpow.pop %v2527
        %v2529 = vmul.f32 %v2516, 1.442695
        %v2530 = vpow.pop %v2529
        %v2531 = vmul.f32 %v2517, 1.442695
        %v2532 = vpow.pop %v2531
        %v2533 = vmul.f32 %v2518, 1.442695
        %v2534 = vpow.pop %v2533
        %v2535 = vsel %vm2486, %v2520, 0.0
        %2536 = vadd.xlane.f32.xlu0 %v2535
        %v2537 = vpop.xlane.xlu0 %2536
        %v2538 = vsel %vm2486, %v2522, 0.0
        %2539 = vadd.xlane.f32.xlu0 %v2538
        %v2540 = vpop.xlane.xlu0 %2539
        %v2541 = vsel %vm2486, %v2524, 0.0
        %2542 = vadd.xlane.f32.xlu0 %v2541
        %v2543 = vpop.xlane.xlu0 %2542
        %v2544 = vsel %vm2486, %v2526, 0.0
        %2545 = vadd.xlane.f32.xlu0 %v2544
        %v2546 = vpop.xlane.xlu0 %2545
        %v2547 = vsel %vm2486, %v2528, 0.0
        %2548 = vadd.xlane.f32.xlu0 %v2547
        %v2549 = vpop.xlane.xlu0 %2548
        %v2550 = vsel %vm2486, %v2530, 0.0
        %2551 = vadd.xlane.f32.xlu0 %v2550
        %v2552 = vpop.xlane.xlu0 %2551
        %v2553 = vsel %vm2486, %v2532, 0.0
        %2554 = vadd.xlane.f32.xlu0 %v2553
        %v2555 = vpop.xlane.xlu0 %2554
        %v2556 = vsel %vm2486, %v2534, 0.0
        %2557 = vadd.xlane.f32.xlu0 %v2556
        %v2558 = vpop.xlane.xlu0 %2557
        %v2559 = vrcp.pop %v2537
        %v2560 = vrcp.pop %v2540
        %v2561 = vrcp.pop %v2543
        %v2562 = vrcp.pop %v2546
        %v2563 = vrcp.pop %v2549
        %v2564 = vrcp.pop %v2552
        %v2565 = vrcp.pop %v2555
        %v2566 = vrcp.pop %v2558
        %v2567 = vmul.f32 %v2520, %v2559
        %v2568 = vmul.f32 %v2522, %v2560
        %v2569 = vmul.f32 %v2524, %v2561
        %v2570 = vmul.f32 %v2526, %v2562
        %v2571 = vmul.f32 %v2528, %v2563
        %v2572 = vmul.f32 %v2530, %v2564
        %v2573 = vmul.f32 %v2532, %v2565
        %v2574 = vmul.f32 %v2534, %v2566
        %v2575 = vpack.c.bf16 %v2568, %v2567
        %v2576 = vpack.c.bf16 %v2570, %v2569
        %v2577 = vpack.c.bf16 %v2572, %v2571
        %v2578 = vpack.c.bf16 %v2574, %v2573
        %v2580 = vsel %vm2486, %v2575, 0
        %v2583 = vsel %vm2103, %v1857, 0
        %2585 = vmatprep.subr.bf16.mxu0 0
        %2586 = vmatpush1.bf16.msra.mxu0 %v1841
        %2587 = vmatprep.subr.bf16.mxu0 0
        %2588 = vmatpush1.bf16.msra.mxu0 %v2583
        %2589 = vmatprep.subr.bf16.mxu0 0
        %2590 = vmatpush1.bf16.msra.mxu0 0
        %2591 = vmatprep.subr.bf16.mxu0 0
        %2592 = vmatpush1.bf16.msra.mxu0 0
        %2593 = vmatprep.subr.bf16.mxu0 0
        %2594 = vmatpush1.bf16.msra.mxu0 0
        %2595 = vmatprep.subr.bf16.mxu0 0
        %2596 = vmatpush1.bf16.msra.mxu0 0
        %2597 = vmatprep.subr.bf16.mxu0 0
        %2598 = vmatpush1.bf16.msra.mxu0 0
        %2599 = vmatprep.subr.bf16.mxu0 0
        %2600 = vmatpush1.bf16.msra.mxu0 0
        %2601 = vmatprep.subr.bf16.mxu0 0
        %2602 = vmatpush1.bf16.msra.mxu0 0
        %2603 = vmatprep.subr.bf16.mxu0 0
        %2604 = vmatpush1.bf16.msra.mxu0 0
        %2605 = vmatprep.subr.bf16.mxu0 0
        %2606 = vmatpush1.bf16.msra.mxu0 0
        %2607 = vmatprep.subr.bf16.mxu0 0
        %2608 = vmatpush1.bf16.msra.mxu0 0
        %2609 = vmatprep.subr.bf16.mxu0 0
        %2610 = vmatpush1.bf16.msra.mxu0 0
        %2611 = vmatprep.subr.bf16.mxu0 0
        %2612 = vmatpush1.bf16.msra.mxu0 0
        %2613 = vmatprep.subr.bf16.mxu0 0
        %2614 = vmatpush1.bf16.msra.mxu0 0
        %2615 = vmatprep.subr.bf16.mxu0 0
        %2616 = vmatpush1.bf16.msra.mxu0 0
        %2617 = vmatprep.mubr.bf16.mxu0 0
        %2618 = vmatmul.mubr.bf16.gmra.mrb[0].mxu0 %v2580
        %v2619 = vpop.f32.mrb[0].mxu0
        %v2620 = vadd.f32 0.0, %v2619
        %v2621 = vpop.f32.mrb[0].mxu0
        %v2622 = vpop.f32.mrb[0].mxu0
        %v2623 = vadd.f32 0.0, %v2622
        %v2624 = vpop.f32.mrb[0].mxu0
        %2625 = vdwg.mxu0
        %v2627 = vsel %vm2486, %v2576, 0
        %v2630 = vsel %vm2103, %v1860, 0
        %2632 = vmatprep.subr.bf16.mxu0 0
        %2633 = vmatpush1.bf16.msra.mxu0 %v1845
        %2634 = vmatprep.subr.bf16.mxu0 0
        %2635 = vmatpush1.bf16.msra.mxu0 %v2630
        %2636 = vmatprep.subr.bf16.mxu0 0
        %2637 = vmatpush1.bf16.msra.mxu0 0
        %2638 = vmatprep.subr.bf16.mxu0 0
        %2639 = vmatpush1.bf16.msra.mxu0 0
        %2640 = vmatprep.subr.bf16.mxu0 0
        %2641 = vmatpush1.bf16.msra.mxu0 0
        %2642 = vmatprep.subr.bf16.mxu0 0
        %2643 = vmatpush1.bf16.msra.mxu0 0
        %2644 = vmatprep.subr.bf16.mxu0 0
        %2645 = vmatpush1.bf16.msra.mxu0 0
        %2646 = vmatprep.subr.bf16.mxu0 0
        %2647 = vmatpush1.bf16.msra.mxu0 0
        %2648 = vmatprep.subr.bf16.mxu0 0
        %2649 = vmatpush1.bf16.msra.mxu0 0
        %2650 = vmatprep.subr.bf16.mxu0 0
        %2651 = vmatpush1.bf16.msra.mxu0 0
        %2652 = vmatprep.subr.bf16.mxu0 0
        %2653 = vmatpush1.bf16.msra.mxu0 0
        %2654 = vmatprep.subr.bf16.mxu0 0
        %2655 = vmatpush1.bf16.msra.mxu0 0
        %2656 = vmatprep.subr.bf16.mxu0 0
        %2657 = vmatpush1.bf16.msra.mxu0 0
        %2658 = vmatprep.subr.bf16.mxu0 0
        %2659 = vmatpush1.bf16.msra.mxu0 0
        %2660 = vmatprep.subr.bf16.mxu0 0
        %2661 = vmatpush1.bf16.msra.mxu0 0
        %2662 = vmatprep.subr.bf16.mxu0 0
        %2663 = vmatpush1.bf16.msra.mxu0 0
        %2664 = vmatprep.mubr.bf16.mxu0 0
        %2665 = vmatmul.mubr.bf16.gmra.mrb[0].mxu0 %v2627
        %v2666 = vpop.f32.mrb[0].mxu0
        %v2667 = vadd.f32 0.0, %v2666
        %v2668 = vpop.f32.mrb[0].mxu0
        %v2669 = vpop.f32.mrb[0].mxu0
        %v2670 = vadd.f32 0.0, %v2669
        %v2671 = vpop.f32.mrb[0].mxu0
        %2672 = vdwg.mxu0
        %v2674 = vsel %vm2486, %v2577, 0
        %v2677 = vsel %vm2103, %v1863, 0
        %2679 = vmatprep.subr.bf16.mxu0 0
        %2680 = vmatpush1.bf16.msra.mxu0 %v1849
        %2681 = vmatprep.subr.bf16.mxu0 0
        %2682 = vmatpush1.bf16.msra.mxu0 %v2677
        %2683 = vmatprep.subr.bf16.mxu0 0
        %2684 = vmatpush1.bf16.msra.mxu0 0
        %2685 = vmatprep.subr.bf16.mxu0 0
        %2686 = vmatpush1.bf16.msra.mxu0 0
        %2687 = vmatprep.subr.bf16.mxu0 0
        %2688 = vmatpush1.bf16.msra.mxu0 0
        %2689 = vmatprep.subr.bf16.mxu0 0
        %2690 = vmatpush1.bf16.msra.mxu0 0
        %2691 = vmatprep.subr.bf16.mxu0 0
        %2692 = vmatpush1.bf16.msra.mxu0 0
        %2693 = vmatprep.subr.bf16.mxu0 0
        %2694 = vmatpush1.bf16.msra.mxu0 0
        %2695 = vmatprep.subr.bf16.mxu0 0
        %2696 = vmatpush1.bf16.msra.mxu0 0
        %2697 = vmatprep.subr.bf16.mxu0 0
        %2698 = vmatpush1.bf16.msra.mxu0 0
        %2699 = vmatprep.subr.bf16.mxu0 0
        %2700 = vmatpush1.bf16.msra.mxu0 0
        %2701 = vmatprep.subr.bf16.mxu0 0
        %2702 = vmatpush1.bf16.msra.mxu0 0
        %2703 = vmatprep.subr.bf16.mxu0 0
        %2704 = vmatpush1.bf16.msra.mxu0 0
        %2705 = vmatprep.subr.bf16.mxu0 0
        %2706 = vmatpush1.bf16.msra.mxu0 0
        %2707 = vmatprep.subr.bf16.mxu0 0
        %2708 = vmatpush1.bf16.msra.mxu0 0
        %2709 = vmatprep.subr.bf16.mxu0 0
        %2710 = vmatpush1.bf16.msra.mxu0 0
        %2711 = vmatprep.mubr.bf16.mxu0 0
        %2712 = vmatmul.mubr.bf16.gmra.mrb[0].mxu0 %v2674
        %v2713 = vpop.f32.mrb[0].mxu0
        %v2714 = vadd.f32 0.0, %v2713
        %v2715 = vpop.f32.mrb[0].mxu0
        %v2716 = vpop.f32.mrb[0].mxu0
        %v2717 = vadd.f32 0.0, %v2716
        %v2718 = vpop.f32.mrb[0].mxu0
        %2719 = vdwg.mxu0
        %v2721 = vsel %vm2486, %v2578, 0
        %v2724 = vsel %vm2103, %v1866, 0
        %2726 = vmatprep.subr.bf16.mxu0 0
        %2727 = vmatpush1.bf16.msra.mxu0 %v1853
        %2728 = vmatprep.subr.bf16.mxu0 0
        %2729 = vmatpush1.bf16.msra.mxu0 %v2724
        %2730 = vmatprep.subr.bf16.mxu0 0
        %2731 = vmatpush1.bf16.msra.mxu0 0
        %2732 = vmatprep.subr.bf16.mxu0 0
        %2733 = vmatpush1.bf16.msra.mxu0 0
        %2734 = vmatprep.subr.bf16.mxu0 0
        %2735 = vmatpush1.bf16.msra.mxu0 0
        %2736 = vmatprep.subr.bf16.mxu0 0
        %2737 = vmatpush1.bf16.msra.mxu0 0
        %2738 = vmatprep.subr.bf16.mxu0 0
        %2739 = vmatpush1.bf16.msra.mxu0 0
        %2740 = vmatprep.subr.bf16.mxu0 0
        %2741 = vmatpush1.bf16.msra.mxu0 0
        %2742 = vmatprep.subr.bf16.mxu0 0
        %2743 = vmatpush1.bf16.msra.mxu0 0
        %2744 = vmatprep.subr.bf16.mxu0 0
        %2745 = vmatpush1.bf16.msra.mxu0 0
        %2746 = vmatprep.subr.bf16.mxu0 0
        %2747 = vmatpush1.bf16.msra.mxu0 0
        %2748 = vmatprep.subr.bf16.mxu0 0
        %2749 = vmatpush1.bf16.msra.mxu0 0
        %2750 = vmatprep.subr.bf16.mxu0 0
        %2751 = vmatpush1.bf16.msra.mxu0 0
        %2752 = vmatprep.subr.bf16.mxu0 0
        %2753 = vmatpush1.bf16.msra.mxu0 0
        %2754 = vmatprep.subr.bf16.mxu0 0
        %2755 = vmatpush1.bf16.msra.mxu0 0
        %2756 = vmatprep.subr.bf16.mxu0 0
        %2757 = vmatpush1.bf16.msra.mxu0 0
        %2758 = vmatprep.mubr.bf16.mxu0 0
        %2759 = vmatmul.mubr.bf16.gmra.mrb[0].mxu0 %v2721
        %v2760 = vpop.f32.mrb[0].mxu0
        %v2761 = vadd.f32 0.0, %v2760
        %v2762 = vpop.f32.mrb[0].mxu0
        %v2763 = vpop.f32.mrb[0].mxu0
        %v2764 = vadd.f32 0.0, %v2763
        %v2765 = vpop.f32.mrb[0].mxu0
        %2766 = vdwg.mxu0
        %v2767 = vpack.c.bf16 %v2142, %v2142
        %v2769 = vunpack.c.l.s4 1983009808
        %v2770 = vunpack.c.0.s8 %v2769
        %v2771 = vlaneseq
        %v2772 = vshrl.u32 %v2771, 7
        %v2773 = vsub.s32 %v2770, %v2772
        %v2774 = vrot.slane %v2767, %v2773
        %v2775 = vpack.c.bf16 %v2234, %v2234
        %v2777 = vunpack.c.l.s4 1983009808
        %v2778 = vunpack.c.0.s8 %v2777
        %v2779 = vlaneseq
        %v2780 = vshrl.u32 %v2779, 7
        %v2781 = vsub.s32 %v2778, %v2780
        %v2782 = vrot.slane %v2775, %v2781
        %v2783 = vcombine.low %v2774, %v2782
        %v2784 = vcombine.high %v2774, %v2782
        %v2786 = vunpack.c.l.s4 1934713408
        %v2787 = vunpack.c.0.s8 %v2786
        %v2788 = vlaneseq
        %v2789 = vshrl.u32 %v2788, 7
        %v2790 = vsub.s32 %v2787, %v2789
        %v2791 = vrot.slane %v2783, %v2790
        %v2793 = vunpack.c.l.s4 1934713408
        %v2794 = vunpack.c.0.s8 %v2793
        %v2795 = vlaneseq
        %v2796 = vshrl.u32 %v2795, 7
        %v2797 = vsub.s32 %v2794, %v2796
        %v2798 = vrot.slane %v2784, %v2797
        %v2799 = vcombine.high %v2791, 0
        %v2800 = vcombine.high %v2798, 0
        %v2801 = vpack.c.bf16 %v2188, %v2188
        %v2803 = vunpack.c.l.s4 1983009808
        %v2804 = vunpack.c.0.s8 %v2803
        %v2805 = vlaneseq
        %v2806 = vshrl.u32 %v2805, 7
        %v2807 = vsub.s32 %v2804, %v2806
        %v2808 = vrot.slane %v2801, %v2807
        %v2809 = vpack.c.bf16 %v2280, %v2280
        %v2811 = vunpack.c.l.s4 1983009808
        %v2812 = vunpack.c.0.s8 %v2811
        %v2813 = vlaneseq
        %v2814 = vshrl.u32 %v2813, 7
        %v2815 = vsub.s32 %v2812, %v2814
        %v2816 = vrot.slane %v2809, %v2815
        %v2817 = vcombine.low %v2808, %v2816
        %v2818 = vcombine.high %v2808, %v2816
        %v2820 = vunpack.c.l.s4 1934713408
        %v2821 = vunpack.c.0.s8 %v2820
        %v2822 = vlaneseq
        %v2823 = vshrl.u32 %v2822, 7
        %v2824 = vsub.s32 %v2821, %v2823
        %v2825 = vrot.slane %v2817, %v2824
        %v2827 = vunpack.c.l.s4 1934713408
        %v2828 = vunpack.c.0.s8 %v2827
        %v2829 = vlaneseq
        %v2830 = vshrl.u32 %v2829, 7
        %v2831 = vsub.s32 %v2828, %v2830
        %v2832 = vrot.slane %v2818, %v2831
        %v2833 = vcombine.high %v2825, 0
        %v2834 = vcombine.high %v2832, 0
        %v2837 = vpack.i.b16 %v2825, %v2791
        %v2839 = vshrl.u32 %v2791, 16
        %v2840 = vshrl.u32 %v2825, 16
        %v2841 = vpack.i.b16 %v2840, %v2839
        %v2845 = vpack.i.b16 %v2833, %v2799
        %v2847 = vshrl.u32 %v2799, 16
        %v2848 = vshrl.u32 %v2833, 16
        %v2849 = vpack.i.b16 %v2848, %v2847
        %v2853 = vpack.i.b16 %v2832, %v2798
        %v2855 = vshrl.u32 %v2798, 16
        %v2856 = vshrl.u32 %v2832, 16
        %v2857 = vpack.i.b16 %v2856, %v2855
        %v2861 = vpack.i.b16 %v2834, %v2800
        %v2863 = vshrl.u32 %v2800, 16
        %v2864 = vshrl.u32 %v2834, 16
        %v2865 = vpack.i.b16 %v2864, %v2863
        %v2867 = vcombine.low %v2837, %v2853
        %v2869 = vunpack.c.l.s4 1983009808
        %v2870 = vunpack.c.0.s8 %v2869
        %v2871 = vlaneseq
        %v2872 = vshrl.u32 %v2871, 7
        %v2873 = vsub.s32 %v2870, %v2872
        %v2874 = vrot.slane %v2867, %v2873
        %v2875 = vcombine.low %v2845, %v2861
        %v2877 = vunpack.c.l.s4 1983009808
        %v2878 = vunpack.c.0.s8 %v2877
        %v2879 = vlaneseq
        %v2880 = vshrl.u32 %v2879, 7
        %v2881 = vsub.s32 %v2878, %v2880
        %v2882 = vrot.slane %v2875, %v2881
        %v2883 = vcombine.low %v2874, %v2882
        %v2885 = vunpack.c.l.s4 1934713408
        %v2886 = vunpack.c.0.s8 %v2885
        %v2887 = vlaneseq
        %v2888 = vshrl.u32 %v2887, 7
        %v2889 = vsub.s32 %v2886, %v2888
        %v2890 = vrot.slane %v2883, %v2889
        %v2891 = vcombine.high %v2890, 0
        %v2892 = vcombine.low %v2841, %v2857
        %v2894 = vunpack.c.l.s4 1983009808
        %v2895 = vunpack.c.0.s8 %v2894
        %v2896 = vlaneseq
        %v2897 = vshrl.u32 %v2896, 7
        %v2898 = vsub.s32 %v2895, %v2897
        %v2899 = vrot.slane %v2892, %v2898
        %v2900 = vcombine.low %v2849, %v2865
        %v2902 = vunpack.c.l.s4 1983009808
        %v2903 = vunpack.c.0.s8 %v2902
        %v2904 = vlaneseq
        %v2905 = vshrl.u32 %v2904, 7
        %v2906 = vsub.s32 %v2903, %v2905
        %v2907 = vrot.slane %v2900, %v2906
        %v2908 = vcombine.low %v2899, %v2907
        %v2910 = vunpack.c.l.s4 1934713408
        %v2911 = vunpack.c.0.s8 %v2910
        %v2912 = vlaneseq
        %v2913 = vshrl.u32 %v2912, 7
        %v2914 = vsub.s32 %v2911, %v2913
        %v2915 = vrot.slane %v2908, %v2914
        %v2916 = vcombine.high %v2915, 0
        %v2919 = vpack.i.b16 %v2915, %v2890
        %v2920 = vshrl.u32 %v2890, 16
        %v2921 = vshrl.u32 %v2915, 16
        %v2922 = vpack.i.b16 %v2921, %v2920
        %v2925 = vpack.i.b16 %v2916, %v2891
        %v2926 = vshrl.u32 %v2891, 16
        %v2927 = vshrl.u32 %v2916, 16
        %v2928 = vpack.i.b16 %v2927, %v2926
        %2929 = vrot.lane.b32.xlu0 %v2922, 8
        %v2930 = vpop.permute.xlu0 %2929
        %2931 = vrot.lane.b32.xlu0 %v2925, 16
        %v2932 = vpop.permute.xlu0 %2931
        %2933 = vrot.lane.b32.xlu0 %v2928, 24
        %v2934 = vpop.permute.xlu0 %2933
        %v2937 = vsel %vm1867, %v2919, %v2930
        %vm2938 = vcmask 130048
        %v2940 = vsel %vm2938, %v2937, %v2932
        %v2942 = vsel %vm2486, %v2940, %v2934
        %v2943 = vpack.c.bf16 %v2623, %v2620
        %v2944 = vpack.c.bf16 %v2670, %v2667
        %v2945 = vpack.c.bf16 %v2717, %v2714
        %v2946 = vpack.c.bf16 %v2764, %v2761
        %v2949 = vpack.i.b16 %v2944, %v2943
        %v2951 = vshrl.u32 %v2943, 16
        %v2952 = vshrl.u32 %v2944, 16
        %v2953 = vpack.i.b16 %v2952, %v2951
        %v2957 = vpack.i.b16 %v2946, %v2945
        %v2959 = vshrl.u32 %v2945, 16
        %v2960 = vshrl.u32 %v2946, 16
        %v2961 = vpack.i.b16 %v2960, %v2959
        %v2964 = vpack.i.b16 0, 0
        %v2966 = vshrl.u32 0, 16
        %v2967 = vpack.i.b16 %v2966, %v2966
        %v2969 = vcombine.high %v2949, %v2964
        %v2971 = vunpack.c.l.s4 1983009808
        %v2972 = vunpack.c.0.s8 %v2971
        %v2973 = vlaneseq
        %v2974 = vshrl.u32 %v2973, 7
        %v2975 = vsub.s32 %v2972, %v2974
        %v2976 = vrot.slane %v2949, %v2975
        %v2978 = vunpack.c.l.s4 1983009808
        %v2979 = vunpack.c.0.s8 %v2978
        %v2980 = vlaneseq
        %v2981 = vshrl.u32 %v2980, 7
        %v2982 = vsub.s32 %v2979, %v2981
        %v2983 = vrot.slane %v2969, %v2982
        %v2984 = vcombine.high %v2957, %v2964
        %v2986 = vunpack.c.l.s4 1983009808
        %v2987 = vunpack.c.0.s8 %v2986
        %v2988 = vlaneseq
        %v2989 = vshrl.u32 %v2988, 7
        %v2990 = vsub.s32 %v2987, %v2989
        %v2991 = vrot.slane %v2957, %v2990
        %v2993 = vunpack.c.l.s4 1983009808
        %v2994 = vunpack.c.0.s8 %v2993
        %v2995 = vlaneseq
        %v2996 = vshrl.u32 %v2995, 7
        %v2997 = vsub.s32 %v2994, %v2996
        %v2998 = vrot.slane %v2984, %v2997
        %v2999 = vcombine.low %v2976, %v2991
        %v3000 = vcombine.high %v2976, %v2991
        %v3002 = vunpack.c.l.s4 1934713408
        %v3003 = vunpack.c.0.s8 %v3002
        %v3004 = vlaneseq
        %v3005 = vshrl.u32 %v3004, 7
        %v3006 = vsub.s32 %v3003, %v3005
        %v3007 = vrot.slane %v2999, %v3006
        %v3009 = vunpack.c.l.s4 1934713408
        %v3010 = vunpack.c.0.s8 %v3009
        %v3011 = vlaneseq
        %v3012 = vshrl.u32 %v3011, 7
        %v3013 = vsub.s32 %v3010, %v3012
        %v3014 = vrot.slane %v3000, %v3013
        %v3015 = vcombine.low %v2983, %v2998
        %v3016 = vcombine.high %v2983, %v2998
        %v3018 = vunpack.c.l.s4 1934713408
        %v3019 = vunpack.c.0.s8 %v3018
        %v3020 = vlaneseq
        %v3021 = vshrl.u32 %v3020, 7
        %v3022 = vsub.s32 %v3019, %v3021
        %v3023 = vrot.slane %v3015, %v3022
        %v3025 = vunpack.c.l.s4 1934713408
        %v3026 = vunpack.c.0.s8 %v3025
        %v3027 = vlaneseq
        %v3028 = vshrl.u32 %v3027, 7
        %v3029 = vsub.s32 %v3026, %v3028
        %v3030 = vrot.slane %v3016, %v3029
        %v3031 = vcombine.high %v3007, 0
        %v3032 = vcombine.high %v3014, 0
        %v3033 = vcombine.high %v3023, 0
        %v3034 = vcombine.high %v3030, 0
        %v3035 = vcombine.high %v2953, %v2967
        %v3037 = vunpack.c.l.s4 1983009808
        %v3038 = vunpack.c.0.s8 %v3037
        %v3039 = vlaneseq
        %v3040 = vshrl.u32 %v3039, 7
        %v3041 = vsub.s32 %v3038, %v3040
        %v3042 = vrot.slane %v2953, %v3041
        %v3044 = vunpack.c.l.s4 1983009808
        %v3045 = vunpack.c.0.s8 %v3044
        %v3046 = vlaneseq
        %v3047 = vshrl.u32 %v3046, 7
        %v3048 = vsub.s32 %v3045, %v3047
        %v3049 = vrot.slane %v3035, %v3048
        %v3050 = vcombine.high %v2961, %v2967
        %v3052 = vunpack.c.l.s4 1983009808
        %v3053 = vunpack.c.0.s8 %v3052
        %v3054 = vlaneseq
        %v3055 = vshrl.u32 %v3054, 7
        %v3056 = vsub.s32 %v3053, %v3055
        %v3057 = vrot.slane %v2961, %v3056
        %v3059 = vunpack.c.l.s4 1983009808
        %v3060 = vunpack.c.0.s8 %v3059
        %v3061 = vlaneseq
        %v3062 = vshrl.u32 %v3061, 7
        %v3063 = vsub.s32 %v3060, %v3062
        %v3064 = vrot.slane %v3050, %v3063
        %v3065 = vcombine.low %v3042, %v3057
        %v3066 = vcombine.high %v3042, %v3057
        %v3068 = vunpack.c.l.s4 1934713408
        %v3069 = vunpack.c.0.s8 %v3068
        %v3070 = vlaneseq
        %v3071 = vshrl.u32 %v3070, 7
        %v3072 = vsub.s32 %v3069, %v3071
        %v3073 = vrot.slane %v3065, %v3072
        %v3075 = vunpack.c.l.s4 1934713408
        %v3076 = vunpack.c.0.s8 %v3075
        %v3077 = vlaneseq
        %v3078 = vshrl.u32 %v3077, 7
        %v3079 = vsub.s32 %v3076, %v3078
        %v3080 = vrot.slane %v3066, %v3079
        %v3081 = vcombine.low %v3049, %v3064
        %v3082 = vcombine.high %v3049, %v3064
        %v3084 = vunpack.c.l.s4 1934713408
        %v3085 = vunpack.c.0.s8 %v3084
        %v3086 = vlaneseq
        %v3087 = vshrl.u32 %v3086, 7
        %v3088 = vsub.s32 %v3085, %v3087
        %v3089 = vrot.slane %v3081, %v3088
        %v3091 = vunpack.c.l.s4 1934713408
        %v3092 = vunpack.c.0.s8 %v3091
        %v3093 = vlaneseq
        %v3094 = vshrl.u32 %v3093, 7
        %v3095 = vsub.s32 %v3092, %v3094
        %v3096 = vrot.slane %v3082, %v3095
        %v3097 = vcombine.high %v3073, 0
        %v3098 = vcombine.high %v3080, 0
        %v3099 = vcombine.high %v3089, 0
        %v3100 = vcombine.high %v3096, 0
        %v3101 = vcombine.low %v3007, %v3014
        %v3103 = vunpack.c.l.s4 1983009808
        %v3104 = vunpack.c.0.s8 %v3103
        %v3105 = vlaneseq
        %v3106 = vshrl.u32 %v3105, 7
        %v3107 = vsub.s32 %v3104, %v3106
        %v3108 = vrot.slane %v3101, %v3107
        %v3109 = vcombine.low %v3031, %v3032
        %v3111 = vunpack.c.l.s4 1983009808
        %v3112 = vunpack.c.0.s8 %v3111
        %v3113 = vlaneseq
        %v3114 = vshrl.u32 %v3113, 7
        %v3115 = vsub.s32 %v3112, %v3114
        %v3116 = vrot.slane %v3109, %v3115
        %v3117 = vcombine.low %v3023, %v3030
        %v3119 = vunpack.c.l.s4 1983009808
        %v3120 = vunpack.c.0.s8 %v3119
        %v3121 = vlaneseq
        %v3122 = vshrl.u32 %v3121, 7
        %v3123 = vsub.s32 %v3120, %v3122
        %v3124 = vrot.slane %v3117, %v3123
        %v3125 = vcombine.low %v3033, %v3034
        %v3127 = vunpack.c.l.s4 1983009808
        %v3128 = vunpack.c.0.s8 %v3127
        %v3129 = vlaneseq
        %v3130 = vshrl.u32 %v3129, 7
        %v3131 = vsub.s32 %v3128, %v3130
        %v3132 = vrot.slane %v3125, %v3131
        %v3133 = vcombine.low %v3108, %v3116
        %v3135 = vunpack.c.l.s4 1934713408
        %v3136 = vunpack.c.0.s8 %v3135
        %v3137 = vlaneseq
        %v3138 = vshrl.u32 %v3137, 7
        %v3139 = vsub.s32 %v3136, %v3138
        %v3140 = vrot.slane %v3133, %v3139
        %v3141 = vcombine.low %v3124, %v3132
        %v3143 = vunpack.c.l.s4 1934713408
        %v3144 = vunpack.c.0.s8 %v3143
        %v3145 = vlaneseq
        %v3146 = vshrl.u32 %v3145, 7
        %v3147 = vsub.s32 %v3144, %v3146
        %v3148 = vrot.slane %v3141, %v3147
        %v3149 = vcombine.low %v3140, %v3148
        %v3150 = vcombine.high %v3140, %v3148
        %v3151 = vcombine.low %v3073, %v3080
        %v3153 = vunpack.c.l.s4 1983009808
        %v3154 = vunpack.c.0.s8 %v3153
        %v3155 = vlaneseq
        %v3156 = vshrl.u32 %v3155, 7
        %v3157 = vsub.s32 %v3154, %v3156
        %v3158 = vrot.slane %v3151, %v3157
        %v3159 = vcombine.low %v3097, %v3098
        %v3161 = vunpack.c.l.s4 1983009808
        %v3162 = vunpack.c.0.s8 %v3161
        %v3163 = vlaneseq
        %v3164 = vshrl.u32 %v3163, 7
        %v3165 = vsub.s32 %v3162, %v3164
        %v3166 = vrot.slane %v3159, %v3165
        %v3167 = vcombine.low %v3089, %v3096
        %v3169 = vunpack.c.l.s4 1983009808
        %v3170 = vunpack.c.0.s8 %v3169
        %v3171 = vlaneseq
        %v3172 = vshrl.u32 %v3171, 7
        %v3173 = vsub.s32 %v3170, %v3172
        %v3174 = vrot.slane %v3167, %v3173
        %v3175 = vcombine.low %v3099, %v3100
        %v3177 = vunpack.c.l.s4 1983009808
        %v3178 = vunpack.c.0.s8 %v3177
        %v3179 = vlaneseq
        %v3180 = vshrl.u32 %v3179, 7
        %v3181 = vsub.s32 %v3178, %v3180
        %v3182 = vrot.slane %v3175, %v3181
        %v3183 = vcombine.low %v3158, %v3166
        %v3185 = vunpack.c.l.s4 1934713408
        %v3186 = vunpack.c.0.s8 %v3185
        %v3187 = vlaneseq
        %v3188 = vshrl.u32 %v3187, 7
        %v3189 = vsub.s32 %v3186, %v3188
        %v3190 = vrot.slane %v3183, %v3189
        %v3191 = vcombine.low %v3174, %v3182
        %v3193 = vunpack.c.l.s4 1934713408
        %v3194 = vunpack.c.0.s8 %v3193
        %v3195 = vlaneseq
        %v3196 = vshrl.u32 %v3195, 7
        %v3197 = vsub.s32 %v3194, %v3196
        %v3198 = vrot.slane %v3191, %v3197
        %v3199 = vcombine.low %v3190, %v3198
        %v3200 = vcombine.high %v3190, %v3198
        %v3203 = vpack.i.b16 %v3199, %v3149
        %v3204 = vshrl.u32 %v3149, 16
        %v3205 = vshrl.u32 %v3199, 16
        %v3206 = vpack.i.b16 %v3205, %v3204
        %v3209 = vpack.i.b16 %v3200, %v3150
        %v3210 = vshrl.u32 %v3150, 16
        %v3211 = vshrl.u32 %v3200, 16
        %v3212 = vpack.i.b16 %v3211, %v3210
        %3213 = vrot.lane.b32.xlu0 %v3206, 8
        %v3214 = vpop.permute.xlu0 %3213
        %3215 = vrot.lane.b32.xlu0 %v3209, 16
        %v3216 = vpop.permute.xlu0 %3215
        %3217 = vrot.lane.b32.xlu0 %v3212, 24
        %v3218 = vpop.permute.xlu0 %3217
        %v3221 = vsel %vm1867, %v3203, %v3214
        %v3223 = vsel %vm2938, %v3221, %v3216
        %v3225 = vsel %vm2486, %v3223, %v3218
        %v3227 = vrot.slane %v3225, 4
        %v3229 = vsel %vm2103, %v2942, %v3227
        %v3230 = vld [vmem:[%s4] sm:$0xf]
        %v3231 = vld [vmem:[%s4 + $0x4] sm:$0xf]
        %v3232 = vld [vmem:[%s4 + $0x8] sm:$0xf]
        %v3233 = vld [vmem:[%s4 + $0xc] sm:$0xf]
        %v3234 = vld [vmem:[%s5] sm:$0x1]
        %v3236 = vlaneseq
        %v3237 = vshrl.u32 %v3236, 7
        %v3238 = vsub.s32 0, %v3237
        %v3239 = vrot.slane %v3234, %v3238
        %v3245 = vunpack.c.l.b16 %v3230
        %v3246 = vunpack.c.l.b16 %v3231
        %v3247 = vunpack.c.l.b16 %v3232
        %v3248 = vunpack.c.l.b16 %v3233
        %v3249 = vpack.c.b16 %v3246, %v3245
        %v3250 = vpack.c.b16 %v3248, %v3247
        %v3253 = vsel %vm340, %v3229, 0
        %v3255 = vsel %vm340, %v3227, 0
        %3257 = vmatprep.subr.bf16.mxu0 0
        %3258 = vmatpush1.bf16.msra.mxu0 %v3249
        %3259 = vmatprep.subr.bf16.mxu0 0
        %3260 = vmatpush1.bf16.msra.mxu0 %v3250
        %3261 = vmatprep.subr.bf16.mxu0 0
        %3262 = vmatpush1.bf16.msra.mxu0 0
        %3263 = vmatprep.subr.bf16.mxu0 0
        %3264 = vmatpush1.bf16.msra.mxu0 0
        %3265 = vmatprep.subr.bf16.mxu0 0
        %3266 = vmatpush1.bf16.msra.mxu0 0
        %3267 = vmatprep.subr.bf16.mxu0 0
        %3268 = vmatpush1.bf16.msra.mxu0 0
        %3269 = vmatprep.subr.bf16.mxu0 0
        %3270 = vmatpush1.bf16.msra.mxu0 0
        %3271 = vmatprep.subr.bf16.mxu0 0
        %3272 = vmatpush1.bf16.msra.mxu0 0
        %3273 = vmatprep.subr.bf16.mxu0 0
        %3274 = vmatpush1.bf16.msra.mxu0 0
        %3275 = vmatprep.subr.bf16.mxu0 0
        %3276 = vmatpush1.bf16.msra.mxu0 0
        %3277 = vmatprep.subr.bf16.mxu0 0
        %3278 = vmatpush1.bf16.msra.mxu0 0
        %3279 = vmatprep.subr.bf16.mxu0 0
        %3280 = vmatpush1.bf16.msra.mxu0 0
        %3281 = vmatprep.subr.bf16.mxu0 0
        %3282 = vmatpush1.bf16.msra.mxu0 0
        %3283 = vmatprep.subr.bf16.mxu0 0
        %3284 = vmatpush1.bf16.msra.mxu0 0
        %3285 = vmatprep.subr.bf16.mxu0 0
        %3286 = vmatpush1.bf16.msra.mxu0 0
        %3287 = vmatprep.subr.bf16.mxu0 0
        %3288 = vmatpush1.bf16.msra.mxu0 0
        %3289 = vmatprep.mubr.bf16.mxu0 0
        %3290 = vmatmul.mubr.bf16.gmra.mrb[0].mxu0 %v3253
        %v3291 = vpop.f32.mrb[0].mxu0
        %v3292 = vadd.f32 %v3239, %v3291
        %v3293 = vpop.f32.mrb[0].mxu0
        %v3294 = vpop.f32.mrb[0].mxu0
        %v3295 = vadd.f32 %v3239, %v3294
        %v3296 = vpop.f32.mrb[0].mxu0
        %3297 = vmatprep.mubr.bf16.mxu0 0
        %3298 = vmatmul.mubr.bf16.gmra.mrb[0].mxu0 %v3255
        %v3299 = vpop.f32.mrb[0].mxu0
        %v3300 = vadd.f32 %v3239, %v3299
        %v3301 = vpop.f32.mrb[0].mxu0
        %v3302 = vpop.f32.mrb[0].mxu0
        %v3303 = vpop.f32.mrb[0].mxu0
        %3304 = vdwg.mxu0
        %3305 = vst.msk [vmem:[%s259] sm:$0xff] %vm340, %v3292
        %3306 = vst.msk [vmem:[%s259 + $0x8] sm:$0xff] %vm340, %v3295
        %3307 = vst.msk [vmem:[%s259 + $0x10] sm:$0xff] %vm340, %v3300
        %s3308 = sand.u32 %s164, 1
        %s3309 = scalar_lea.sflag [#allocation3], %s3308
        %s3310 = sand.u32 %s164, 1
        %s3311 = smul.addr %s3310, 24
        %s3312 = scalar_lea.vmem [#allocation2], %s3311
        // Predicated region
        $region45: #{tpu_custom_call.1} parent=43 // pred_check
          %p3313 = pneg %p174
        $region46: #{tpu_custom_call.1} parent=43 // pred_check_branch
          %3315 = sbr.rel (%p3313) target = $region48
        $region47: #{tpu_custom_call.1} parent=43 // pred_region
          %s3317 = ssub.s32 384, 384
          %3318 = vsyncadd %s3309, %s3317
          %s3319 = smul.addr %s20, 3
          %s3320 = smul.addr %s3319, 128
          %s3321 = scalar_lea.hbm %s6, %s3320
          %s3322 = sshll.u32 %s3312, 4
          %s3323 = int_to_ptr.vmem [resolvable:$true] %s3322
          %3328 = dma.vmem_to_hbm [thread:$0]  %s3323, 384, %s3321, %s3309, 128, 128, 8
        $region48: #{tpu_custom_call.1} parent=43 // pred_fallthru
          _
      $region44: #{tpu_custom_call.1} parent=5 // pred_fallthru
        _
      %p3329 = scmp.le.s32.totalorder 2, %s15
      // Predicated region
      $region49: #{tpu_custom_call.1} parent=5 // pred_check
        %p3330 = pneg %p3329
      $region50: #{tpu_custom_call.1} parent=5 // pred_check_branch
        %3332 = sbr.rel (%p3330) target = $region52
      $region51: #{tpu_custom_call.1} parent=5 // pred_region
        %s3333 = ssub.s32 %s15, 2
        // Predicated region
        $region53: #{tpu_custom_call.1} parent=51 // pred_check
          %p3334 = pneg %p180
        $region54: #{tpu_custom_call.1} parent=51 // pred_check_branch
          %3336 = sbr.rel (%p3334) target = $region56
        $region55: #{tpu_custom_call.1} parent=51 // pred_region
          %s3337 = sand.u32 %s165, 1
          %s3338 = scalar_lea.sflag [#allocation3], %s3337
          %s3339 = sand.u32 %s165, 1
          %s3340 = smul.addr %s3339, 24
          %s3341 = scalar_lea.vmem [#allocation2], %s3340
          %3342 = dma.done %s3338, 384
        $region56: #{tpu_custom_call.1} parent=51 // pred_fallthru
          _
      $region52: #{tpu_custom_call.1} parent=5 // pred_fallthru
        _
    $region6: #{tpu_custom_call.1} parent=1 // loop_footer
      %s19 = sadd.s32 1, %s15
    $region7: #{tpu_custom_call.1} parent=1 // loop_footer_branch
      %14 = sbr.rel target = $region3
    $region8: #{tpu_custom_call.1} parent=1 // loop_exit
      _
    %3343 = vsyncpa [#allocation3], 1
    %s3344 = scalar_lea.sflag [#allocation3], 1
    %3345 = vsyncpa %s3344, 1

</llo_original>
